<compile_context>
chip_gen: v5e
topology: v5e:2x2
jax: 0.10.0
libtpu: 0.0.40
codegen_flags: <defaults>
</compile_context>

<pallas_src>
import functools

import numpy as np
import jax
import jax.numpy as jnp
from jax.experimental import pallas as pl
from jax.experimental.pallas import tpu as pltpu


def _ru(x, m):
    return (x + m - 1) // m * m


def _row_tile(R):
    """Largest row tile (>=8) that divides R; fall back to a single full block."""
    for t in (1024, 512, 256, 128, 64, 32, 16, 8):
        if R % t == 0:
            return t
    return R


def _k_plan(K):
    """(tk, padded K).  K <= 512 uses a single full-extent K block (no padding)."""
    if K <= 512:
        return K, K
    best = None
    for tk in (512, 256, 128):
        Kp = _ru(K, tk)
        if best is None or Kp < best[1]:
            best = (tk, Kp)
    return best


# ----------------------------------------------------------------------------
# Pallas kernels
# ----------------------------------------------------------------------------

def _mm_kernel(a_ref, b_ref, bias_ref, o_ref, acc_ref, *, act):
    """Tiled matmul (bf16 in, f32 acc) with fused bias + activation.
    Grid = (M/tm, N/tn, K/tk), K last ("arbitrary")."""
    @pl.when(pl.program_id(2) == 0)
    def _():
        acc_ref[...] = jnp.zeros_like(acc_ref)

    if a_ref.shape[1] == 1:
        # Degenerate contraction (cin=1 convs / deconvs): outer product on the VPU.
        acc_ref[...] += (a_ref[...].astype(jnp.float32) *
                         b_ref[...].astype(jnp.float32))
    else:
        acc_ref[...] += jnp.dot(a_ref[...], b_ref[...],
                                preferred_element_type=jnp.float32)

    @pl.when(pl.program_id(2) == pl.num_programs(2) - 1)
    def _():
        r = acc_ref[...] + bias_ref[...]
        if act == "relu":
            r = jnp.maximum(r, 0.0)
        elif act == "sigmoid":
            r = jax.nn.sigmoid(r)
        o_ref[...] = r.astype(o_ref.dtype)


@functools.lru_cache(maxsize=None)
def _build_matmul(Mp, Kp, Np, act, tm, tk, tn):
    grid = (Mp // tm, Np // tn, Kp // tk)
    fn = pl.pallas_call(
        functools.partial(_mm_kernel, act=act),
        out_shape=jax.ShapeDtypeStruct((Mp, Np), jnp.float32),
        grid_spec=pltpu.PrefetchScalarGridSpec(
            num_scalar_prefetch=0,
            grid=grid,
            in_specs=[
                pl.BlockSpec((tm, tk), lambda i, j, k: (i, k)),
                pl.BlockSpec((tk, tn), lambda i, j, k: (k, j)),
                pl.BlockSpec((1, tn), lambda i, j, k: (0, j)),
            ],
            out_specs=pl.BlockSpec((tm, tn), lambda i, j, k: (i, j)),
            scratch_shapes=[pltpu.VMEM((tm, tn), jnp.float32)],
        ),
        compiler_params=pltpu.CompilerParams(
            dimension_semantics=("parallel", "parallel", "arbitrary")),
    )
    return jax.jit(fn)


def matmul_bias_act(A, B, bias, act="none"):
    M, K = A.shape
    _, N = B.shape

    # ---- N plan: never pad small output widths (full-dim minor block is legal) ----
    if N < 128:
        tn, Np = N, N
    elif N % 256 == 0:
        tn, Np = 256, N
    elif N % 128 == 0:
        tn, Np = 128, N
    else:
        tn, Np = 128, _ru(N, 128)

    # ---- K plan ----
    tk, Kp = _k_plan(K)

    # ---- M plan: pick a divisor tile; pad only if M is not a multiple of 8 ----
    Mp = M if M % 8 == 0 else _ru(M, 8)
    tm = next(t for t in (512, 256, 128, 64, 32, 16, 8) if Mp % t == 0)

    A = A.astype(jnp.bfloat16)
    B = B.astype(jnp.bfloat16)
    if (Mp, Kp) != (M, K):
        A = jnp.pad(A, ((0, Mp - M), (0, Kp - K)))
    if (Kp, Np) != (K, N):
        B = jnp.pad(B, ((0, Kp - K), (0, Np - N)))
    b = bias.astype(jnp.float32)
    if Np != N:
        b = jnp.pad(b, (0, Np - N))
    b = b.reshape(1, Np)

    out = _build_matmul(Mp, Kp, Np, act, tm, tk, tn)(A, B, b)
    if (Mp, Np) != (M, N):
        out = out[:M, :N]
    return out


def _gate_kernel(t_ref, e_ref, o_ref):
    # (1 - sigmoid(t)) * enc + enc == enc * (2 - sigmoid(t)); t broadcast over channels.
    o_ref[...] = e_ref[...] * (2.0 - jax.nn.sigmoid(t_ref[...]))


def gate(t, enc):
    N, D, H, W, C = enc.shape
    R = N * D * H * W
    rt = _row_tile(R)
    out = pl.pallas_call(
        _gate_kernel,
        out_shape=jax.ShapeDtypeStruct((R, C), jnp.float32),
        grid=(R // rt,),
        in_specs=[
            pl.BlockSpec((rt, 1), lambda i: (i, 0)),
            pl.BlockSpec((rt, C), lambda i: (i, 0)),
        ],
        out_specs=pl.BlockSpec((rt, C), lambda i: (i, 0)),
        compiler_params=pltpu.CompilerParams(dimension_semantics=("parallel",)),
    )(t.reshape(R, 1), enc.reshape(R, C))
    return out.reshape(enc.shape)


def _bn_stats_kernel(x_ref, s_ref, q_ref):
    @pl.when(pl.program_id(0) == 0)
    def _():
        s_ref[...] = jnp.zeros_like(s_ref)
        q_ref[...] = jnp.zeros_like(q_ref)
    x = x_ref[...]
    s_ref[...] += jnp.sum(x, axis=0, keepdims=True)
    q_ref[...] += jnp.sum(x * x, axis=0, keepdims=True)


def _affine_relu_kernel(x_ref, s_ref, b_ref, o_ref):
    o_ref[...] = jnp.maximum(x_ref[...] * s_ref[...] + b_ref[...], 0.0)


def batchnorm_relu(x, gamma, beta, eps=1e-5):
    """Training-mode BatchNorm3d (per-batch biased stats) + ReLU, two Pallas passes."""
    N, D, H, W, C = x.shape
    R = N * D * H * W
    rt = _row_tile(R)
    xf = x.reshape(R, C)

    s, q = pl.pallas_call(
        _bn_stats_kernel,
        out_shape=(jax.ShapeDtypeStruct((1, C), jnp.float32),
                   jax.ShapeDtypeStruct((1, C), jnp.float32)),
        grid=(R // rt,),
        in_specs=[pl.BlockSpec((rt, C), lambda i: (i, 0))],
        out_specs=(pl.BlockSpec((1, C), lambda i: (0, 0)),
                   pl.BlockSpec((1, C), lambda i: (0, 0))),
        compiler_params=pltpu.CompilerParams(dimension_semantics=("arbitrary",)),
    )(xf)

    mean = s[0] / R
    var = jnp.maximum(q[0] / R - mean * mean, 0.0)   # biased variance, as in BN
    scale = gamma * jax.lax.rsqrt(var + eps)
    shift = beta - mean * scale

    out = pl.pallas_call(
        _affine_relu_kernel,
        out_shape=jax.ShapeDtypeStruct((R, C), jnp.float32),
        grid=(R // rt,),
        in_specs=[
            pl.BlockSpec((rt, C), lambda i: (i, 0)),
            pl.BlockSpec((1, C), lambda i: (0, 0)),
            pl.BlockSpec((1, C), lambda i: (0, 0)),
        ],
        out_specs=pl.BlockSpec((rt, C), lambda i: (i, 0)),
        compiler_params=pltpu.CompilerParams(dimension_semantics=("parallel",)),
    )(xf, scale.reshape(1, C), shift.reshape(1, C))
    return out.reshape(x.shape)


def maxpool2x(x):
    """MaxPool3d(kernel=2, stride=2); assumes even D, H, W. Input read exactly once."""
    N, D, H, W, C = x.shape
    Do, Ho, Wo = D // 2, H // 2, W // 2
    # Fold width pairs into the channel (lane) dim — free row-major reshape in XLA.
    xr = x.reshape(N, D, H, Wo, 2 * C)

    def kernel(x_ref, o_ref):
        v = x_ref[...]                               # (1, 2, H, Wo, 2C)
        v = jnp.maximum(v[:, 0], v[:, 1])            # depth pairs   -> (1, H, Wo, 2C)
        v = jnp.maximum(v[..., :C], v[..., C:])      # width pairs   -> (1, H, Wo, C)
        v = v.reshape(1, Ho, 2, Wo, C)
        v = jnp.maximum(v[:, :, 0], v[:, :, 1])      # height pairs  -> (1, Ho, Wo, C)
        o_ref[...] = v.reshape(1, 1, Ho, Wo, C)

    return pl.pallas_call(
        kernel,
        out_shape=jax.ShapeDtypeStruct((N, Do, Ho, Wo, C), jnp.float32),
        grid=(N, Do),
        in_specs=[pl.BlockSpec((1, 2, H, Wo, 2 * C), lambda n, d: (n, d, 0, 0, 0))],
        out_specs=pl.BlockSpec((1, 1, Ho, Wo, C), lambda n, d: (n, d, 0, 0, 0)),
        compiler_params=pltpu.CompilerParams(
            dimension_semantics=("parallel", "parallel")),
    )(xr)


# ----------------------------------------------------------------------------
# Conv / ConvTranspose lowering (bf16 im2col glue in JAX, GEMM in Pallas)
# ----------------------------------------------------------------------------

def conv3d(x, w, b, padding=(0, 0, 0), act="none"):
    """x: NDHWC.  w: torch layout (Cout, Cin, kd, kh, kw).  b: (Cout,)."""
    cout, cin, kd, kh, kw = w.shape
    pd, ph, pw = padding
    xp = jnp.pad(x.astype(jnp.bfloat16),
                 ((0, 0), (pd, pd), (ph, ph), (pw, pw), (0, 0)))
    N, Dp, Hp, Wp, _ = xp.shape
    Do, Ho, Wo = Dp - kd + 1, Hp - kh + 1, Wp - kw + 1

    K = kd * kh * kw * cin
    _, Kp = _k_plan(K)

    if kd == kh == kw == 1 and Kp == K:
        A = xp.reshape(N * Do * Ho * Wo, K)
    else:
        patches = []
        for dk in range(kd):
            for hk in range(kh):
                for wk in range(kw):
                    patches.append(xp[:, dk:dk + Do, hk:hk + Ho, wk:wk + Wo, :])
        if Kp > K:   # fold K zero-padding into the same concat (no second copy)
            patches.append(jnp.zeros((N, Do, Ho, Wo, Kp - K), jnp.bfloat16))
        A = jnp.concatenate(patches, axis=-1).reshape(N * Do * Ho * Wo, Kp)

    B = jnp.transpose(w, (2, 3, 4, 1, 0)).reshape(K, cout).astype(jnp.bfloat16)
    if Kp > K:
        B = jnp.pad(B, ((0, Kp - K), (0, 0)))

    out = matmul_bias_act(A, B, b, act=act)
    return out.reshape(N, Do, Ho, Wo, cout)


def deconv2x(x, w, b):
    """ConvTranspose3d(kernel=2, stride=2). w: torch layout (Cin, Cout, 2, 2, 2)."""
    N, D, H, W, Cin = x.shape
    cin, cout = w.shape[0], w.shape[1]
    A = x.reshape(N * D * H * W, Cin)
    # Columns ordered (kd, kh, kw, cout): the scatter keeps cout on the minor dim.
    B = jnp.transpose(w, (0, 2, 3, 4, 1)).reshape(cin, 8 * cout)
    bias = jnp.tile(b, 8)
    R = matmul_bias_act(A, B, bias, act="none")
    R = R.reshape(N, D, H, W, 2, 2, 2, cout)
    R = jnp.transpose(R, (0, 1, 4, 2, 5, 3, 6, 7))   # N, D,2, H,2, W,2, Cout
    return R.reshape(N, 2 * D, 2 * H, 2 * W, cout)


# ----------------------------------------------------------------------------
# Parameter init (deterministic, torch-default-like)
# ----------------------------------------------------------------------------

class KeyGen:
    def __init__(self, seed=0):
        self.key = jax.random.PRNGKey(seed)

    def __call__(self):
        self.key, sub = jax.random.split(self.key)
        return sub


def init_conv(kg, cin, cout, k):
    fan_in = cin * k[0] * k[1] * k[2]
    bound = 1.0 / np.sqrt(fan_in)
    w = jax.random.uniform(kg(), (cout, cin) + tuple(k), jnp.float32, -bound, bound)
    b = jax.random.uniform(kg(), (cout,), jnp.float32, -bound, bound)
    return {"w": w, "b": b}


def init_deconv(kg, cin, cout):
    fan_in = cout * 8
    bound = 1.0 / np.sqrt(fan_in)
    w = jax.random.uniform(kg(), (cin, cout, 2, 2, 2), jnp.float32, -bound, bound)
    b = jax.random.uniform(kg(), (cout,), jnp.float32, -bound, bound)
    return {"w": w, "b": b}


def init_bn(cout):
    return {"g": jnp.ones((cout,), jnp.float32), "b": jnp.zeros((cout,), jnp.float32)}


def init_encoder(kg, cin, c1, c2, c3):
    return {
        "p1_1": init_conv(kg, cin, c1[0], (1, 1, 1)),
        "p1_2": init_conv(kg, c1[0], c1[1], (5, 5, 5)),
        "p2":   init_conv(kg, cin, c2, (1, 1, 1)),
        "p3_1": init_conv(kg, cin, c3[0], (1, 1, 1)),
        "p3_2": init_conv(kg, c3[0], c3[1], (1, 1, 5)),
        "p3_3": init_conv(kg, c3[1], c3[2], (1, 5, 1)),
        "p3_4": init_conv(kg, c3[2], c3[3], (5, 1, 1)),
    }


def init_decoder(kg, cin, cout):
    return {
        "c1": init_conv(kg, cin, cout, (3, 3, 3)), "bn1": init_bn(cout),
        "c2": init_conv(kg, cout, cout, (3, 3, 3)), "bn2": init_bn(cout),
    }


def init_params(seed=0):
    kg = KeyGen(seed)
    return {
        "enc1": init_encoder(kg, 1, (8, 16), 16, (16, 32, 32, 32)),
        "enc2": init_encoder(kg, 64, (16, 32), 32, (32, 64, 64, 64)),
        "enc3": init_encoder(kg, 128, (32, 64), 64, (64, 128, 128, 128)),
        "bridge": init_encoder(kg, 256, (64, 128), 128, (128, 256, 256, 256)),
        "conv1_1": init_conv(kg, 512, 1, (1, 1, 1)),
        "conv2_2": init_conv(kg, 256, 1, (1, 1, 1)),
        "conv3_3": init_conv(kg, 128, 1, (1, 1, 1)),
        "convTrans1": init_deconv(kg, 1, 1),
        "convTrans2": init_deconv(kg, 1, 1),
        "convTrans3": init_deconv(kg, 1, 1),
        "dec3": init_decoder(kg, 512, 256),
        "dec2": init_decoder(kg, 256, 128),
        "dec1": init_decoder(kg, 128, 64),
        "up3": init_deconv(kg, 512, 256),
        "up2": init_deconv(kg, 256, 128),
        "up1": init_deconv(kg, 128, 64),
        "final": init_conv(kg, 64, 1, (1, 1, 1)),
    }


# ----------------------------------------------------------------------------
# Forward pass (mirrors Res_muti_new.forward)
# ----------------------------------------------------------------------------

def reduction_encoder(p, x):
    p1 = conv3d(x, p["p1_1"]["w"], p["p1_1"]["b"], (0, 0, 0), "sigmoid")
    p1 = conv3d(p1, p["p1_2"]["w"], p["p1_2"]["b"], (2, 2, 2), "relu")
    p2 = conv3d(x, p["p2"]["w"], p["p2"]["b"], (0, 0, 0), "relu")
    p3 = conv3d(x, p["p3_1"]["w"], p["p3_1"]["b"], (2, 2, 2), "relu")
    p3 = conv3d(p3, p["p3_2"]["w"], p["p3_2"]["b"], (0, 0, 0), "relu")
    p3 = conv3d(p3, p["p3_3"]["w"], p["p3_3"]["b"], (0, 0, 0), "relu")
    p3 = conv3d(p3, p["p3_4"]["w"], p["p3_4"]["b"], (0, 0, 0), "relu")
    return jnp.concatenate([p1, p2, p3], axis=-1)


def decoder(p, x):
    y = conv3d(x, p["c1"]["w"], p["c1"]["b"], (1, 1, 1), "none")
    y = batchnorm_relu(y, p["bn1"]["g"], p["bn1"]["b"])
    y = conv3d(y, p["c2"]["w"], p["c2"]["b"], (1, 1, 1), "none")
    y = batchnorm_relu(y, p["bn2"]["g"], p["bn2"]["b"])
    return y


def res_muti_new_forward(params, x_ncdhw):
    x = jnp.transpose(x_ncdhw.astype(jnp.float32), (0, 2, 3, 4, 1))  # -> NDHWC

    enc1 = reduction_encoder(params["enc1"], x)
    down1 = maxpool2x(enc1)
    enc2 = reduction_encoder(params["enc2"], down1)
    down2 = maxpool2x(enc2)

    con3_3 = conv3d(enc2, params["conv3_3"]["w"], params["conv3_3"]["b"])
    ct3 = deconv2x(con3_3, params["convTrans3"]["w"], params["convTrans3"]["b"])
    x3 = gate(ct3, enc1)                       # (1 - sigmoid)*enc1 + enc1

    enc3 = reduction_encoder(params["enc3"], down2)
    down3 = maxpool2x(enc3)

    con2_2 = conv3d(enc3, params["conv2_2"]["w"], params["conv2_2"]["b"])
    ct2 = deconv2x(con2_2, params["convTrans2"]["w"], params["convTrans2"]["b"])
    x2 = gate(ct2, enc2)

    bridge = reduction_encoder(params["bridge"], down3)

    c11 = conv3d(bridge, params["conv1_1"]["w"], params["conv1_1"]["b"])
    ct1 = deconv2x(c11, params["convTrans1"]["w"], params["convTrans1"]["b"])
    xg = gate(ct1, enc3)

    up3 = deconv2x(bridge, params["up3"]["w"], params["up3"]["b"])
    up3 = jnp.concatenate([up3, xg], axis=-1)
    dec3 = decoder(params["dec3"], up3)

    up2 = deconv2x(dec3, params["up2"]["w"], params["up2"]["b"])
    up2 = jnp.concatenate([up2, x2], axis=-1)
    dec2 = decoder(params["dec2"], up2)

    up1 = deconv2x(dec2, params["up1"]["w"], params["up1"]["b"])
    up1 = jnp.concatenate([up1, x3], axis=-1)
    dec1 = decoder(params["dec1"], up1)

    final = conv3d(dec1, params["final"]["w"], params["final"]["b"],
                   (0, 0, 0), "sigmoid")
    return jnp.transpose(final, (0, 4, 1, 2, 3))  # -> NCDHW


# ----------------------------------------------------------------------------

if __name__ == "__main__":
    params = init_params(seed=0)
    # Input: NCDHW, 1 channel, spatial divisible by 8 (three 2x down-samplings).
    x = jax.random.normal(jax.random.PRNGKey(0), (2, 1, 8, 8, 8), jnp.float32)

    forward = jax.jit(res_muti_new_forward)
    out = forward(params, x)
    out = jax.block_until_ready(out)

    assert out.shape == (2, 1, 8, 8, 8), out.shape
    assert bool(jnp.all(jnp.isfinite(out)))
    assert bool(jnp.all((out >= 0.0) & (out <= 1.0)))  # final sigmoid
    print("KERNEL_OK")
</pallas_src>

<mosaic_0001>
module attributes {stable_mosaic.version = 11 : i64} {
  func.func @_mm_kernel(%arg0: i32, %arg1: i32, %arg2: i32, %arg3: memref<512x1xbf16, #tpu.memory_space<vmem>>, %arg4: memref<1x8xbf16, #tpu.memory_space<vmem>>, %arg5: memref<1x8xf32, #tpu.memory_space<vmem>>, %arg6: memref<512x8xf32, #tpu.memory_space<vmem>>, %arg7: memref<512x8xf32, #tpu.memory_space<vmem>>) attributes {dimension_semantics = [#tpu.dimension_semantics<parallel>, #tpu.dimension_semantics<parallel>, #tpu.dimension_semantics<arbitrary>], iteration_bounds = array<i64: 2, 1, 1>, scalar_prefetch = 0 : i64, scratch_operands = 1 : i64, tpu.core_type = #tpu.core_type<tc>, window_params = [{transform_indices = @transform_0, window_bounds = array<i64: 512, 1>}, {transform_indices = @transform_1, window_bounds = array<i64: 1, 8>}, {transform_indices = @transform_2, window_bounds = array<i64: 1, 8>}, {transform_indices = @transform_3, window_bounds = array<i64: 512, 8>}]} {
    %c0_i32 = arith.constant 0 : i32
    %0 = arith.cmpi eq, %arg2, %c0_i32 : i32
    %1 = arith.extui %0 : i1 to i32
    %c0_i32_0 = arith.constant 0 : i32
    %2 = arith.cmpi ne, %1, %c0_i32_0 : i32
    scf.if %2 {
      %cst = arith.constant 0.000000e+00 : f32
      %16 = vector.broadcast %cst : f32 to vector<512x8xf32>
      %c0_10 = arith.constant 0 : index
      %c0_11 = arith.constant 0 : index
      %17 = vector.load %arg7[%c0_10, %c0_11] : memref<512x8xf32, #tpu.memory_space<vmem>>, vector<512x8xf32>
      tpu.vector_store %arg7[%c0_10, %c0_11], %16 {strides = array<i32>} : memref<512x8xf32, #tpu.memory_space<vmem>>, vector<512x8xf32>,
    } else {
    }
    %c0 = arith.constant 0 : index
    %c0_1 = arith.constant 0 : index
    %3 = vector.load %arg7[%c0, %c0_1] : memref<512x8xf32, #tpu.memory_space<vmem>>, vector<512x8xf32>
    %c0_2 = arith.constant 0 : index
    %c0_3 = arith.constant 0 : index
    %4 = vector.load %arg3[%c0_2, %c0_3] : memref<512x1xbf16, #tpu.memory_space<vmem>>, vector<512x1xbf16>
    %5 = arith.extf %4 : vector<512x1xbf16> to vector<512x1xf32>
    %c0_4 = arith.constant 0 : index
    %c0_5 = arith.constant 0 : index
    %6 = vector.load %arg4[%c0_4, %c0_5] : memref<1x8xbf16, #tpu.memory_space<vmem>>, vector<1x8xbf16>
    %7 = arith.extf %6 : vector<1x8xbf16> to vector<1x8xf32>
    %8 = vector.broadcast %5 : vector<512x1xf32> to vector<512x8xf32>
    %9 = vector.broadcast %7 : vector<1x8xf32> to vector<512x8xf32>
    %10 = arith.mulf %8, %9 : vector<512x8xf32>
    %11 = arith.addf %3, %10 : vector<512x8xf32>
    %c0_6 = arith.constant 0 : index
    %c0_7 = arith.constant 0 : index
    %12 = vector.load %arg7[%c0_6, %c0_7] : memref<512x8xf32, #tpu.memory_space<vmem>>, vector<512x8xf32>
    tpu.vector_store %arg7[%c0_6, %c0_7], %11 {strides = array<i32>} : memref<512x8xf32, #tpu.memory_space<vmem>>, vector<512x8xf32>,
    %c0_i32_8 = arith.constant 0 : i32
    %13 = arith.cmpi eq, %arg2, %c0_i32_8 : i32
    %14 = arith.extui %13 : i1 to i32
    %c0_i32_9 = arith.constant 0 : i32
    %15 = arith.cmpi ne, %14, %c0_i32_9 : i32
    scf.if %15 {
      %c0_10 = arith.constant 0 : index
      %c0_11 = arith.constant 0 : index
      %16 = vector.load %arg7[%c0_10, %c0_11] : memref<512x8xf32, #tpu.memory_space<vmem>>, vector<512x8xf32>
      %c0_12 = arith.constant 0 : index
      %c0_13 = arith.constant 0 : index
      %17 = vector.load %arg5[%c0_12, %c0_13] : memref<1x8xf32, #tpu.memory_space<vmem>>, vector<1x8xf32>
      %18 = vector.broadcast %17 : vector<1x8xf32> to vector<512x8xf32>
      %19 = arith.addf %16, %18 : vector<512x8xf32>
      %20 = arith.negf %19 : vector<512x8xf32>
      %21 = math.exp %20 : vector<512x8xf32>
      %cst = arith.constant 1.000000e+00 : f32
      %22 = vector.broadcast %cst : f32 to vector<512x8xf32>
      %23 = arith.addf %22, %21 : vector<512x8xf32>
      %24 = arith.divf %22, %23 : vector<512x8xf32>
      %c0_14 = arith.constant 0 : index
      %c0_15 = arith.constant 0 : index
      %25 = vector.load %arg6[%c0_14, %c0_15] : memref<512x8xf32, #tpu.memory_space<vmem>>, vector<512x8xf32>
      tpu.vector_store %arg6[%c0_14, %c0_15], %24 {strides = array<i32>} : memref<512x8xf32, #tpu.memory_space<vmem>>, vector<512x8xf32>,
    } else {
    }
    return
  }
  func.func @transform_0(%arg0: i32, %arg1: i32, %arg2: i32) -> (i32, i32) {
    %c0_i32 = arith.constant 0 : i32
    return %arg0, %arg2 : i32, i32
  }
  func.func @transform_1(%arg0: i32, %arg1: i32, %arg2: i32) -> (i32, i32) {
    %c0_i32 = arith.constant 0 : i32
    return %arg2, %arg1 : i32, i32
  }
  func.func @transform_2(%arg0: i32, %arg1: i32, %arg2: i32) -> (i32, i32) {
    %c0_i32 = arith.constant 0 : i32
    %c0_i32_0 = arith.constant 0 : i32
    return %c0_i32, %arg1 : i32, i32
  }
  func.func @transform_3(%arg0: i32, %arg1: i32, %arg2: i32) -> (i32, i32) {
    %c0_i32 = arith.constant 0 : i32
    return %arg0, %arg1 : i32, i32
  }
}

</mosaic_0001>

<llo_original>
// kernel: tpu_custom_call.1
$region0: #{tpu_custom_call.1}
  #allocation0 [shape = 'u32[]', space=smem, size = 0x4, offset = 0x4, fixed_abs, tag = 'smem constant byte address 0x4 - core index']
  #allocation1 [shape = 'u32[72,128]{1,0:T(1,128)}', space=vmem, size = 0x9000, scoped, tag = 'internal scratch']
  #allocation2 [shape = 'f32[512,8]{1,0:T(8,128)}', space=vmem, size = 0x40000, scoped, tag = 'scratch operand']
  %s0 = inlined_call_operand.vmem [shape: bf16[1024,1], index: 0, kind: input, shape index: {}]
  %s1 = inlined_call_operand.vmem [shape: bf16[1,8], index: 1, kind: input, shape index: {}]
  %s2 = inlined_call_operand.vmem [shape: f32[1,8], index: 2, kind: input, shape index: {}]
  %s3 = inlined_call_operand.vmem [shape: f32[1024,8], index: 3, kind: output, shape index: {}]
  %s4 = sld [smem:[#allocation0]]
  $region53: #{tpu_custom_call.1} parent=0
    _
  %s6 = ssub.s32 1, %s4
  %s7 = scalar_select 0, %s6, %s4
  loop: start=0, step=1, limit=4
  $region2: #{tpu_custom_call.1} parent=0 // loop_pre_header
    _
  $region3: #{tpu_custom_call.1} parent=0 // loop_header
    %s9 = sphi 0, %s13
    %p10 = scmp.ge.s32.totalorder %s9, 4
    %s16 = sphi 0, %s35
    %s17 = sphi 0, %s31
    %s18 = sphi 0, %s27
    %s19 = sphi 0, %s16
    %s20 = sphi 0, %s17
    %s21 = sphi 0, %s18
    %s22 = sphi 0, %s19
    %s23 = sphi 0, %s20
    %s24 = sphi 0, %s21
    %s40 = sphi 0, %s42
    %s43 = sphi 0, %s40
    %s44 = sphi 0, %s43
    %s60 = sphi 0, %s44
    %s68 = sphi 0, %s70
    %s71 = sphi 0, %s68
    %s72 = sphi 0, %s71
    %s88 = sphi 0, %s72
    %s94 = sphi 0, %s96
    %s97 = sphi 0, %s94
    %s98 = sphi 0, %s97
    %s114 = sphi 0, %s98
    %s122 = sphi 0, %s124
    %s125 = sphi 0, %s122
    %s126 = sphi 0, %s125
    %s142 = sphi 0, %s126
  $region4: #{tpu_custom_call.1} parent=0 // loop_header_branch
    %12 = sbr.rel (%p10) target = $region8
  $region5: #{tpu_custom_call.1} parent=0 // loop_body
    %s14 = ssub.s32 %s9, 1
    %s15 = ssub.s32 %s9, 2
    %s25 = sadd.s32 1, %s18
    %p26 = scmp.ge.s32.totalorder %s25, 1
    %s27 = scalar_select %p26, 0, %s25
    %s28 = sadd.s32 1, %s17
    %s29 = scalar_select %p26, %s28, %s17
    %p30 = scmp.ge.s32.totalorder %s29, 1
    %s31 = scalar_select %p30, 0, %s29
    %s32 = sadd.s32 1, %s16
    %s33 = scalar_select %p30, %s32, %s16
    %p34 = scmp.ge.s32.totalorder %s33, 2
    %s35 = scalar_select %p34, 0, %s33
    %s36 = ssub.s32 %s16, %s35
    %s37 = ssub.s32 %s18, %s27
    %s38 = sor.u32 %s36, %s37
    %p39 = scmp.eq.s32.totalorder %s38, 0
    %s41 = sadd.s32 %s40, 1
    %s42 = scalar_select %p39, %s40, %s41
    %p45 = pneg %p39
    %p46 = scmp.eq.s32.totalorder %s9, 1
    %p47 = por %p45, %p46
    %p48 = scmp.ne.s32.totalorder %s40, %s43
    %p49 = scmp.eq.s32.totalorder %s9, 0
    %p50 = por %p48, %p49
    %p51 = scmp.ne.s32.totalorder %s40, %s43
    %p52 = scmp.eq.s32.totalorder %s14, 1
    %p53 = por %p51, %p52
    %p54 = scmp.ne.s32.totalorder %s43, %s44
    %p55 = scmp.eq.s32.totalorder %s14, 0
    %p56 = por %p54, %p55
    %p57 = scmp.ne.s32.totalorder %s43, %s44
    %p58 = scmp.eq.s32.totalorder %s15, 1
    %p59 = por %p57, %p58
    %p61 = scmp.ne.s32.totalorder %s44, %s60
    %p62 = scmp.eq.s32.totalorder %s15, 0
    %p63 = por %p61, %p62
    %s64 = ssub.s32 %s18, %s27
    %s65 = ssub.s32 %s17, %s31
    %s66 = sor.u32 %s64, %s65
    %p67 = scmp.eq.s32.totalorder %s66, 0
    %s69 = sadd.s32 %s68, 1
    %s70 = scalar_select %p67, %s68, %s69
    %p73 = pneg %p67
    %p74 = scmp.eq.s32.totalorder %s9, 1
    %p75 = por %p73, %p74
    %p76 = scmp.ne.s32.totalorder %s68, %s71
    %p77 = scmp.eq.s32.totalorder %s9, 0
    %p78 = por %p76, %p77
    %p79 = scmp.ne.s32.totalorder %s68, %s71
    %p80 = scmp.eq.s32.totalorder %s14, 1
    %p81 = por %p79, %p80
    %p82 = scmp.ne.s32.totalorder %s71, %s72
    %p83 = scmp.eq.s32.totalorder %s14, 0
    %p84 = por %p82, %p83
    %p85 = scmp.ne.s32.totalorder %s71, %s72
    %p86 = scmp.eq.s32.totalorder %s15, 1
    %p87 = por %p85, %p86
    %p89 = scmp.ne.s32.totalorder %s72, %s88
    %p90 = scmp.eq.s32.totalorder %s15, 0
    %p91 = por %p89, %p90
    %s92 = ssub.s32 %s17, %s31
    %p93 = scmp.eq.s32.totalorder %s92, 0
    %s95 = sadd.s32 %s94, 1
    %s96 = scalar_select %p93, %s94, %s95
    %p99 = pneg %p93
    %p100 = scmp.eq.s32.totalorder %s9, 1
    %p101 = por %p99, %p100
    %p102 = scmp.ne.s32.totalorder %s94, %s97
    %p103 = scmp.eq.s32.totalorder %s9, 0
    %p104 = por %p102, %p103
    %p105 = scmp.ne.s32.totalorder %s94, %s97
    %p106 = scmp.eq.s32.totalorder %s14, 1
    %p107 = por %p105, %p106
    %p108 = scmp.ne.s32.totalorder %s97, %s98
    %p109 = scmp.eq.s32.totalorder %s14, 0
    %p110 = por %p108, %p109
    %p111 = scmp.ne.s32.totalorder %s97, %s98
    %p112 = scmp.eq.s32.totalorder %s15, 1
    %p113 = por %p111, %p112
    %p115 = scmp.ne.s32.totalorder %s98, %s114
    %p116 = scmp.eq.s32.totalorder %s15, 0
    %p117 = por %p115, %p116
    %s118 = ssub.s32 %s16, %s35
    %s119 = ssub.s32 %s17, %s31
    %s120 = sor.u32 %s118, %s119
    %p121 = scmp.eq.s32.totalorder %s120, 0
    %s123 = sadd.s32 %s122, 1
    %s124 = scalar_select %p121, %s122, %s123
    %p127 = pneg %p121
    %p128 = scmp.eq.s32.totalorder %s9, 1
    %p129 = por %p127, %p128
    %p130 = scmp.ne.s32.totalorder %s122, %s125
    %p131 = scmp.eq.s32.totalorder %s9, 0
    %p132 = por %p130, %p131
    %p133 = scmp.ne.s32.totalorder %s122, %s125
    %p134 = scmp.eq.s32.totalorder %s14, 1
    %p135 = por %p133, %p134
    %p136 = scmp.ne.s32.totalorder %s125, %s126
    %p137 = scmp.eq.s32.totalorder %s14, 0
    %p138 = por %p136, %p137
    %p139 = scmp.ne.s32.totalorder %s125, %s126
    %p140 = scmp.eq.s32.totalorder %s15, 1
    %p141 = por %p139, %p140
    %p143 = scmp.ne.s32.totalorder %s126, %s142
    %p144 = scmp.eq.s32.totalorder %s15, 0
    %p145 = por %p143, %p144
    %p146 = scmp.le.s32.totalorder 1, %s9
    %p147 = scmp.lt.s32.totalorder %s9, 3
    %p148 = pnand %p146, %p147
    %p149 = pneg %p148
    // Predicated region
    $region9: #{tpu_custom_call.1} parent=5 // pred_check
      _
    $region10: #{tpu_custom_call.1} parent=5 // pred_check_branch
      %151 = sbr.rel (%p148) target = $region12
    $region11: #{tpu_custom_call.1} parent=5 // pred_region
      %s152 = ssub.s32 %s9, 1
      // Predicated region
      $region13: #{tpu_custom_call.1} parent=11 // pred_check
        %p153 = pneg %p84
      $region14: #{tpu_custom_call.1} parent=11 // pred_check_branch
        %155 = sbr.rel (%p153) target = $region16
      $region15: #{tpu_custom_call.1} parent=11 // pred_region
        %p156 = scmp.lt.s32.totalorder %s21, 0
        %s157 = scalar_select %p156, %s21, 0
        %p158 = scmp.lt.s32.totalorder %s20, 0
        %s159 = scalar_select %p158, %s20, 0
        %s160 = sadd.s32 %s159, %s157
        %s161 = scalar_lea.vmem %s1, %s160
      $region16: #{tpu_custom_call.1} parent=11 // pred_fallthru
        _
      // Predicated region
      $region17: #{tpu_custom_call.1} parent=11 // pred_check
        %p162 = pneg %p110
      $region18: #{tpu_custom_call.1} parent=11 // pred_check_branch
        %164 = sbr.rel (%p162) target = $region20
      $region19: #{tpu_custom_call.1} parent=11 // pred_region
        %p165 = scmp.lt.s32.totalorder %s20, 0
        %s166 = scalar_select %p165, %s20, 0
        %s167 = scalar_lea.vmem %s2, %s166
      $region20: #{tpu_custom_call.1} parent=11 // pred_fallthru
        _
    $region12: #{tpu_custom_call.1} parent=5 // pred_fallthru
      _
    %p168 = scmp.lt.s32.totalorder %s9, 2
    // Predicated region
    $region21: #{tpu_custom_call.1} parent=5 // pred_check
      %p169 = pneg %p168
    $region22: #{tpu_custom_call.1} parent=5 // pred_check_branch
      %171 = sbr.rel (%p169) target = $region24
    $region23: #{tpu_custom_call.1} parent=5 // pred_region
      // Predicated region
      $region25: #{tpu_custom_call.1} parent=23 // pred_check
        %p172 = pneg %p50
      $region26: #{tpu_custom_call.1} parent=23 // pred_check_branch
        %174 = sbr.rel (%p172) target = $region28
      $region27: #{tpu_custom_call.1} parent=23 // pred_region
        %s175 = smul.u32 64, %s16
        %p176 = scmp.lt.s32.totalorder %s175, 127
        %s177 = scalar_select %p176, %s175, 127
        %p178 = scmp.lt.s32.totalorder %s18, 0
        %s179 = scalar_select %p178, %s18, 0
        %s180 = sadd.s32 %s179, %s177
        %s181 = smul.addr %s180, 4
        %s182 = scalar_lea.vmem %s0, %s181
        %s183 = smul.u32 64, %s16
      $region28: #{tpu_custom_call.1} parent=23 // pred_fallthru
        _
    $region24: #{tpu_custom_call.1} parent=5 // pred_fallthru
      _
    %p184 = scmp.le.s32.totalorder 1, %s9
    %p185 = scmp.lt.s32.totalorder %s9, 3
    %p186 = pnand %p184, %p185
    %p187 = pneg %p186
    // Predicated region
    $region29: #{tpu_custom_call.1} parent=5 // pred_check
      _
    $region30: #{tpu_custom_call.1} parent=5 // pred_check_branch
      %189 = sbr.rel (%p186) target = $region32
    $region31: #{tpu_custom_call.1} parent=5 // pred_region
      %s190 = ssub.s32 %s9, 1
      %s191 = smul.u32 64, %s19
      %p192 = scmp.lt.s32.totalorder %s191, 127
      %s193 = scalar_select %p192, %s191, 127
      %p194 = scmp.lt.s32.totalorder %s21, 0
      %s195 = scalar_select %p194, %s21, 0
      %s196 = sadd.s32 %s195, %s193
      %s197 = smul.addr %s196, 4
      %s198 = scalar_lea.vmem %s0, %s197
      %p199 = pneg %p56
      %p200 = pneg %p53
      %p201 = scmp.lt.s32.totalorder %s21, 0
      %s202 = scalar_select %p201, %s21, 0
      %p203 = scmp.lt.s32.totalorder %s20, 0
      %s204 = scalar_select %p203, %s20, 0
      %s205 = sadd.s32 %s204, %s202
      %s206 = scalar_lea.vmem %s1, %s205
      %p207 = pneg %p84
      %p208 = pneg %p81
      %p209 = scmp.lt.s32.totalorder %s20, 0
      %s210 = scalar_select %p209, %s20, 0
      %s211 = scalar_lea.vmem %s2, %s210
      %p212 = pneg %p110
      %p213 = pneg %p107
      %p214 = pneg %p138
      %p215 = pneg %p135
      %s216 = smul.u32 64, %s19
      %p217 = scmp.lt.s32.totalorder %s216, 127
      %s218 = scalar_select %p217, %s216, 127
      %p219 = scmp.lt.s32.totalorder %s20, 0
      %s220 = scalar_select %p219, %s20, 0
      %s221 = sadd.s32 %s220, %s218
      %s222 = smul.addr %s221, 8
      %s223 = scalar_lea.vmem %s3, %s222
      %s224 = smul.u32 64, %s19
      %p225 = scmp.lt.s32.totalorder %s224, 127
      %s226 = scalar_select %p225, %s224, 127
      %p227 = scmp.lt.s32.totalorder %s21, 0
      %s228 = scalar_select %p227, %s21, 0
      %s229 = sadd.s32 %s228, %s226
      %s230 = smul.addr %s229, 4
      %s231 = scalar_lea.vmem %s0, %s230
      %s232 = smul.u32 64, %s19
      %p233 = scmp.lt.s32.totalorder %s21, 0
      %s234 = scalar_select %p233, %s21, 0
      %p235 = scmp.lt.s32.totalorder %s20, 0
      %s236 = scalar_select %p235, %s20, 0
      %s237 = sadd.s32 %s236, %s234
      %s238 = scalar_lea.vmem %s1, %s237
      %p239 = scmp.lt.s32.totalorder %s20, 0
      %s240 = scalar_select %p239, %s20, 0
      %s241 = scalar_lea.vmem %s2, %s240
      %s242 = smul.u32 64, %s19
      %p243 = scmp.lt.s32.totalorder %s242, 127
      %s244 = scalar_select %p243, %s242, 127
      %p245 = scmp.lt.s32.totalorder %s20, 0
      %s246 = scalar_select %p245, %s20, 0
      %s247 = sadd.s32 %s246, %s244
      %s248 = smul.addr %s247, 8
      %s249 = scalar_lea.vmem %s3, %s248
      %s250 = smul.u32 64, %s19
      %p251 = scmp.eq.s32.totalorder %s21, 0
      // Predicated region
      $region33: #{tpu_custom_call.1} parent=31 // pred_check
        %p252 = pneg %p251
      $region34: #{tpu_custom_call.1} parent=31 // pred_check_branch
        %254 = sbr.rel (%p252) target = $region36
      $region35: #{tpu_custom_call.1} parent=31 // pred_region
        %vm255 = vcmask 64512
        %256 = vst.msk [vmem:[#allocation2] sm:$0xff] %vm255, 0.0
        %257 = vst.msk [vmem:[#allocation2 + $0x8] sm:$0xff] %vm255, 0.0
        %258 = vst.msk [vmem:[#allocation2 + $0x10] sm:$0xff] %vm255, 0.0
        %259 = vst.msk [vmem:[#allocation2 + $0x18] sm:$0xff] %vm255, 0.0
        %260 = vst.msk [vmem:[#allocation2 + $0x20] sm:$0xff] %vm255, 0.0
        %261 = vst.msk [vmem:[#allocation2 + $0x28] sm:$0xff] %vm255, 0.0
        %262 = vst.msk [vmem:[#allocation2 + $0x30] sm:$0xff] %vm255, 0.0
        %263 = vst.msk [vmem:[#allocation2 + $0x38] sm:$0xff] %vm255, 0.0
        %264 = vst.msk [vmem:[#allocation2 + $0x40] sm:$0xff] %vm255, 0.0
        %265 = vst.msk [vmem:[#allocation2 + $0x48] sm:$0xff] %vm255, 0.0
        %266 = vst.msk [vmem:[#allocation2 + $0x50] sm:$0xff] %vm255, 0.0
        %267 = vst.msk [vmem:[#allocation2 + $0x58] sm:$0xff] %vm255, 0.0
        %268 = vst.msk [vmem:[#allocation2 + $0x60] sm:$0xff] %vm255, 0.0
        %269 = vst.msk [vmem:[#allocation2 + $0x68] sm:$0xff] %vm255, 0.0
        %270 = vst.msk [vmem:[#allocation2 + $0x70] sm:$0xff] %vm255, 0.0
        %271 = vst.msk [vmem:[#allocation2 + $0x78] sm:$0xff] %vm255, 0.0
        %272 = vst.msk [vmem:[#allocation2 + $0x80] sm:$0xff] %vm255, 0.0
        %273 = vst.msk [vmem:[#allocation2 + $0x88] sm:$0xff] %vm255, 0.0
        %274 = vst.msk [vmem:[#allocation2 + $0x90] sm:$0xff] %vm255, 0.0
        %275 = vst.msk [vmem:[#allocation2 + $0x98] sm:$0xff] %vm255, 0.0
        %276 = vst.msk [vmem:[#allocation2 + $0xa0] sm:$0xff] %vm255, 0.0
        %277 = vst.msk [vmem:[#allocation2 + $0xa8] sm:$0xff] %vm255, 0.0
        %278 = vst.msk [vmem:[#allocation2 + $0xb0] sm:$0xff] %vm255, 0.0
        %279 = vst.msk [vmem:[#allocation2 + $0xb8] sm:$0xff] %vm255, 0.0
        %280 = vst.msk [vmem:[#allocation2 + $0xc0] sm:$0xff] %vm255, 0.0
        %281 = vst.msk [vmem:[#allocation2 + $0xc8] sm:$0xff] %vm255, 0.0
        %282 = vst.msk [vmem:[#allocation2 + $0xd0] sm:$0xff] %vm255, 0.0
        %283 = vst.msk [vmem:[#allocation2 + $0xd8] sm:$0xff] %vm255, 0.0
        %284 = vst.msk [vmem:[#allocation2 + $0xe0] sm:$0xff] %vm255, 0.0
        %285 = vst.msk [vmem:[#allocation2 + $0xe8] sm:$0xff] %vm255, 0.0
        %286 = vst.msk [vmem:[#allocation2 + $0xf0] sm:$0xff] %vm255, 0.0
        %287 = vst.msk [vmem:[#allocation2 + $0xf8] sm:$0xff] %vm255, 0.0
        %288 = vst.msk [vmem:[#allocation2 + $0x100] sm:$0xff] %vm255, 0.0
        %289 = vst.msk [vmem:[#allocation2 + $0x108] sm:$0xff] %vm255, 0.0
        %290 = vst.msk [vmem:[#allocation2 + $0x110] sm:$0xff] %vm255, 0.0
        %291 = vst.msk [vmem:[#allocation2 + $0x118] sm:$0xff] %vm255, 0.0
        %292 = vst.msk [vmem:[#allocation2 + $0x120] sm:$0xff] %vm255, 0.0
        %293 = vst.msk [vmem:[#allocation2 + $0x128] sm:$0xff] %vm255, 0.0
        %294 = vst.msk [vmem:[#allocation2 + $0x130] sm:$0xff] %vm255, 0.0
        %295 = vst.msk [vmem:[#allocation2 + $0x138] sm:$0xff] %vm255, 0.0
        %296 = vst.msk [vmem:[#allocation2 + $0x140] sm:$0xff] %vm255, 0.0
        %297 = vst.msk [vmem:[#allocation2 + $0x148] sm:$0xff] %vm255, 0.0
        %298 = vst.msk [vmem:[#allocation2 + $0x150] sm:$0xff] %vm255, 0.0
        %299 = vst.msk [vmem:[#allocation2 + $0x158] sm:$0xff] %vm255, 0.0
        %300 = vst.msk [vmem:[#allocation2 + $0x160] sm:$0xff] %vm255, 0.0
        %301 = vst.msk [vmem:[#allocation2 + $0x168] sm:$0xff] %vm255, 0.0
        %302 = vst.msk [vmem:[#allocation2 + $0x170] sm:$0xff] %vm255, 0.0
        %303 = vst.msk [vmem:[#allocation2 + $0x178] sm:$0xff] %vm255, 0.0
        %304 = vst.msk [vmem:[#allocation2 + $0x180] sm:$0xff] %vm255, 0.0
        %305 = vst.msk [vmem:[#allocation2 + $0x188] sm:$0xff] %vm255, 0.0
        %306 = vst.msk [vmem:[#allocation2 + $0x190] sm:$0xff] %vm255, 0.0
        %307 = vst.msk [vmem:[#allocation2 + $0x198] sm:$0xff] %vm255, 0.0
        %308 = vst.msk [vmem:[#allocation2 + $0x1a0] sm:$0xff] %vm255, 0.0
        %309 = vst.msk [vmem:[#allocation2 + $0x1a8] sm:$0xff] %vm255, 0.0
        %310 = vst.msk [vmem:[#allocation2 + $0x1b0] sm:$0xff] %vm255, 0.0
        %311 = vst.msk [vmem:[#allocation2 + $0x1b8] sm:$0xff] %vm255, 0.0
        %312 = vst.msk [vmem:[#allocation2 + $0x1c0] sm:$0xff] %vm255, 0.0
        %313 = vst.msk [vmem:[#allocation2 + $0x1c8] sm:$0xff] %vm255, 0.0
        %314 = vst.msk [vmem:[#allocation2 + $0x1d0] sm:$0xff] %vm255, 0.0
        %315 = vst.msk [vmem:[#allocation2 + $0x1d8] sm:$0xff] %vm255, 0.0
        %316 = vst.msk [vmem:[#allocation2 + $0x1e0] sm:$0xff] %vm255, 0.0
        %317 = vst.msk [vmem:[#allocation2 + $0x1e8] sm:$0xff] %vm255, 0.0
        %318 = vst.msk [vmem:[#allocation2 + $0x1f0] sm:$0xff] %vm255, 0.0
        %319 = vst.msk [vmem:[#allocation2 + $0x1f8] sm:$0xff] %vm255, 0.0
      $region36: #{tpu_custom_call.1} parent=31 // pred_fallthru
        _
      %v320 = vld [vmem:[#allocation2] sm:$0xff]
      %v321 = vld [vmem:[#allocation2 + $0x8] sm:$0xff]
      %v322 = vld [vmem:[#allocation2 + $0x10] sm:$0xff]
      %v323 = vld [vmem:[#allocation2 + $0x18] sm:$0xff]
      %v324 = vld [vmem:[#allocation2 + $0x20] sm:$0xff]
      %v325 = vld [vmem:[#allocation2 + $0x28] sm:$0xff]
      %v326 = vld [vmem:[#allocation2 + $0x30] sm:$0xff]
      %v327 = vld [vmem:[#allocation2 + $0x38] sm:$0xff]
      %v328 = vld [vmem:[#allocation2 + $0x40] sm:$0xff]
      %v329 = vld [vmem:[#allocation2 + $0x48] sm:$0xff]
      %v330 = vld [vmem:[#allocation2 + $0x50] sm:$0xff]
      %v331 = vld [vmem:[#allocation2 + $0x58] sm:$0xff]
      %v332 = vld [vmem:[#allocation2 + $0x60] sm:$0xff]
      %v333 = vld [vmem:[#allocation2 + $0x68] sm:$0xff]
      %v334 = vld [vmem:[#allocation2 + $0x70] sm:$0xff]
      %v335 = vld [vmem:[#allocation2 + $0x78] sm:$0xff]
      %v336 = vld [vmem:[#allocation2 + $0x80] sm:$0xff]
      %v337 = vld [vmem:[#allocation2 + $0x88] sm:$0xff]
      %v338 = vld [vmem:[#allocation2 + $0x90] sm:$0xff]
      %v339 = vld [vmem:[#allocation2 + $0x98] sm:$0xff]
      %v340 = vld [vmem:[#allocation2 + $0xa0] sm:$0xff]
      %v341 = vld [vmem:[#allocation2 + $0xa8] sm:$0xff]
      %v342 = vld [vmem:[#allocation2 + $0xb0] sm:$0xff]
      %v343 = vld [vmem:[#allocation2 + $0xb8] sm:$0xff]
      %v344 = vld [vmem:[#allocation2 + $0xc0] sm:$0xff]
      %v345 = vld [vmem:[#allocation2 + $0xc8] sm:$0xff]
      %v346 = vld [vmem:[#allocation2 + $0xd0] sm:$0xff]
      %v347 = vld [vmem:[#allocation2 + $0xd8] sm:$0xff]
      %v348 = vld [vmem:[#allocation2 + $0xe0] sm:$0xff]
      %v349 = vld [vmem:[#allocation2 + $0xe8] sm:$0xff]
      %v350 = vld [vmem:[#allocation2 + $0xf0] sm:$0xff]
      %v351 = vld [vmem:[#allocation2 + $0xf8] sm:$0xff]
      %v352 = vld [vmem:[#allocation2 + $0x100] sm:$0xff]
      %v353 = vld [vmem:[#allocation2 + $0x108] sm:$0xff]
      %v354 = vld [vmem:[#allocation2 + $0x110] sm:$0xff]
      %v355 = vld [vmem:[#allocation2 + $0x118] sm:$0xff]
      %v356 = vld [vmem:[#allocation2 + $0x120] sm:$0xff]
      %v357 = vld [vmem:[#allocation2 + $0x128] sm:$0xff]
      %v358 = vld [vmem:[#allocation2 + $0x130] sm:$0xff]
      %v359 = vld [vmem:[#allocation2 + $0x138] sm:$0xff]
      %v360 = vld [vmem:[#allocation2 + $0x140] sm:$0xff]
      %v361 = vld [vmem:[#allocation2 + $0x148] sm:$0xff]
      %v362 = vld [vmem:[#allocation2 + $0x150] sm:$0xff]
      %v363 = vld [vmem:[#allocation2 + $0x158] sm:$0xff]
      %v364 = vld [vmem:[#allocation2 + $0x160] sm:$0xff]
      %v365 = vld [vmem:[#allocation2 + $0x168] sm:$0xff]
      %v366 = vld [vmem:[#allocation2 + $0x170] sm:$0xff]
      %v367 = vld [vmem:[#allocation2 + $0x178] sm:$0xff]
      %v368 = vld [vmem:[#allocation2 + $0x180] sm:$0xff]
      %v369 = vld [vmem:[#allocation2 + $0x188] sm:$0xff]
      %v370 = vld [vmem:[#allocation2 + $0x190] sm:$0xff]
      %v371 = vld [vmem:[#allocation2 + $0x198] sm:$0xff]
      %v372 = vld [vmem:[#allocation2 + $0x1a0] sm:$0xff]
      %v373 = vld [vmem:[#allocation2 + $0x1a8] sm:$0xff]
      %v374 = vld [vmem:[#allocation2 + $0x1b0] sm:$0xff]
      %v375 = vld [vmem:[#allocation2 + $0x1b8] sm:$0xff]
      %v376 = vld [vmem:[#allocation2 + $0x1c0] sm:$0xff]
      %v377 = vld [vmem:[#allocation2 + $0x1c8] sm:$0xff]
      %v378 = vld [vmem:[#allocation2 + $0x1d0] sm:$0xff]
      %v379 = vld [vmem:[#allocation2 + $0x1d8] sm:$0xff]
      %v380 = vld [vmem:[#allocation2 + $0x1e0] sm:$0xff]
      %v381 = vld [vmem:[#allocation2 + $0x1e8] sm:$0xff]
      %v382 = vld [vmem:[#allocation2 + $0x1f0] sm:$0xff]
      %v383 = vld [vmem:[#allocation2 + $0x1f8] sm:$0xff]
      %v384 = vld [vmem:[%s231] sm:$0xf]
      %v385 = vld [vmem:[%s231 + $0x4] sm:$0xf]
      %v386 = vld [vmem:[%s231 + $0x8] sm:$0xf]
      %v387 = vld [vmem:[%s231 + $0xc] sm:$0xf]
      %v388 = vld [vmem:[%s231 + $0x10] sm:$0xf]
      %v389 = vld [vmem:[%s231 + $0x14] sm:$0xf]
      %v390 = vld [vmem:[%s231 + $0x18] sm:$0xf]
      %v391 = vld [vmem:[%s231 + $0x1c] sm:$0xf]
      %v392 = vld [vmem:[%s231 + $0x20] sm:$0xf]
      %v393 = vld [vmem:[%s231 + $0x24] sm:$0xf]
      %v394 = vld [vmem:[%s231 + $0x28] sm:$0xf]
      %v395 = vld [vmem:[%s231 + $0x2c] sm:$0xf]
      %v396 = vld [vmem:[%s231 + $0x30] sm:$0xf]
      %v397 = vld [vmem:[%s231 + $0x34] sm:$0xf]
      %v398 = vld [vmem:[%s231 + $0x38] sm:$0xf]
      %v399 = vld [vmem:[%s231 + $0x3c] sm:$0xf]
      %v400 = vld [vmem:[%s231 + $0x40] sm:$0xf]
      %v401 = vld [vmem:[%s231 + $0x44] sm:$0xf]
      %v402 = vld [vmem:[%s231 + $0x48] sm:$0xf]
      %v403 = vld [vmem:[%s231 + $0x4c] sm:$0xf]
      %v404 = vld [vmem:[%s231 + $0x50] sm:$0xf]
      %v405 = vld [vmem:[%s231 + $0x54] sm:$0xf]
      %v406 = vld [vmem:[%s231 + $0x58] sm:$0xf]
      %v407 = vld [vmem:[%s231 + $0x5c] sm:$0xf]
      %v408 = vld [vmem:[%s231 + $0x60] sm:$0xf]
      %v409 = vld [vmem:[%s231 + $0x64] sm:$0xf]
      %v410 = vld [vmem:[%s231 + $0x68] sm:$0xf]
      %v411 = vld [vmem:[%s231 + $0x6c] sm:$0xf]
      %v412 = vld [vmem:[%s231 + $0x70] sm:$0xf]
      %v413 = vld [vmem:[%s231 + $0x74] sm:$0xf]
      %v414 = vld [vmem:[%s231 + $0x78] sm:$0xf]
      %v415 = vld [vmem:[%s231 + $0x7c] sm:$0xf]
      %v416 = vld [vmem:[%s231 + $0x80] sm:$0xf]
      %v417 = vld [vmem:[%s231 + $0x84] sm:$0xf]
      %v418 = vld [vmem:[%s231 + $0x88] sm:$0xf]
      %v419 = vld [vmem:[%s231 + $0x8c] sm:$0xf]
      %v420 = vld [vmem:[%s231 + $0x90] sm:$0xf]
      %v421 = vld [vmem:[%s231 + $0x94] sm:$0xf]
      %v422 = vld [vmem:[%s231 + $0x98] sm:$0xf]
      %v423 = vld [vmem:[%s231 + $0x9c] sm:$0xf]
      %v424 = vld [vmem:[%s231 + $0xa0] sm:$0xf]
      %v425 = vld [vmem:[%s231 + $0xa4] sm:$0xf]
      %v426 = vld [vmem:[%s231 + $0xa8] sm:$0xf]
      %v427 = vld [vmem:[%s231 + $0xac] sm:$0xf]
      %v428 = vld [vmem:[%s231 + $0xb0] sm:$0xf]
      %v429 = vld [vmem:[%s231 + $0xb4] sm:$0xf]
      %v430 = vld [vmem:[%s231 + $0xb8] sm:$0xf]
      %v431 = vld [vmem:[%s231 + $0xbc] sm:$0xf]
      %v432 = vld [vmem:[%s231 + $0xc0] sm:$0xf]
      %v433 = vld [vmem:[%s231 + $0xc4] sm:$0xf]
      %v434 = vld [vmem:[%s231 + $0xc8] sm:$0xf]
      %v435 = vld [vmem:[%s231 + $0xcc] sm:$0xf]
      %v436 = vld [vmem:[%s231 + $0xd0] sm:$0xf]
      %v437 = vld [vmem:[%s231 + $0xd4] sm:$0xf]
      %v438 = vld [vmem:[%s231 + $0xd8] sm:$0xf]
      %v439 = vld [vmem:[%s231 + $0xdc] sm:$0xf]
      %v440 = vld [vmem:[%s231 + $0xe0] sm:$0xf]
      %v441 = vld [vmem:[%s231 + $0xe4] sm:$0xf]
      %v442 = vld [vmem:[%s231 + $0xe8] sm:$0xf]
      %v443 = vld [vmem:[%s231 + $0xec] sm:$0xf]
      %v444 = vld [vmem:[%s231 + $0xf0] sm:$0xf]
      %v445 = vld [vmem:[%s231 + $0xf4] sm:$0xf]
      %v446 = vld [vmem:[%s231 + $0xf8] sm:$0xf]
      %v447 = vld [vmem:[%s231 + $0xfc] sm:$0xf]
      %v448 = vunpack.c.l.bf16 %v384
      %v449 = vunpack.c.l.bf16 %v385
      %v450 = vunpack.c.l.bf16 %v386
      %v451 = vunpack.c.l.bf16 %v387
      %v452 = vunpack.c.l.bf16 %v388
      %v453 = vunpack.c.l.bf16 %v389
      %v454 = vunpack.c.l.bf16 %v390
      %v455 = vunpack.c.l.bf16 %v391
      %v456 = vunpack.c.l.bf16 %v392
      %v457 = vunpack.c.l.bf16 %v393
      %v458 = vunpack.c.l.bf16 %v394
      %v459 = vunpack.c.l.bf16 %v395
      %v460 = vunpack.c.l.bf16 %v396
      %v461 = vunpack.c.l.bf16 %v397
      %v462 = vunpack.c.l.bf16 %v398
      %v463 = vunpack.c.l.bf16 %v399
      %v464 = vunpack.c.l.bf16 %v400
      %v465 = vunpack.c.l.bf16 %v401
      %v466 = vunpack.c.l.bf16 %v402
      %v467 = vunpack.c.l.bf16 %v403
      %v468 = vunpack.c.l.bf16 %v404
      %v469 = vunpack.c.l.bf16 %v405
      %v470 = vunpack.c.l.bf16 %v406
      %v471 = vunpack.c.l.bf16 %v407
      %v472 = vunpack.c.l.bf16 %v408
      %v473 = vunpack.c.l.bf16 %v409
      %v474 = vunpack.c.l.bf16 %v410
      %v475 = vunpack.c.l.bf16 %v411
      %v476 = vunpack.c.l.bf16 %v412
      %v477 = vunpack.c.l.bf16 %v413
      %v478 = vunpack.c.l.bf16 %v414
      %v479 = vunpack.c.l.bf16 %v415
      %v480 = vunpack.c.l.bf16 %v416
      %v481 = vunpack.c.l.bf16 %v417
      %v482 = vunpack.c.l.bf16 %v418
      %v483 = vunpack.c.l.bf16 %v419
      %v484 = vunpack.c.l.bf16 %v420
      %v485 = vunpack.c.l.bf16 %v421
      %v486 = vunpack.c.l.bf16 %v422
      %v487 = vunpack.c.l.bf16 %v423
      %v488 = vunpack.c.l.bf16 %v424
      %v489 = vunpack.c.l.bf16 %v425
      %v490 = vunpack.c.l.bf16 %v426
      %v491 = vunpack.c.l.bf16 %v427
      %v492 = vunpack.c.l.bf16 %v428
      %v493 = vunpack.c.l.bf16 %v429
      %v494 = vunpack.c.l.bf16 %v430
      %v495 = vunpack.c.l.bf16 %v431
      %v496 = vunpack.c.l.bf16 %v432
      %v497 = vunpack.c.l.bf16 %v433
      %v498 = vunpack.c.l.bf16 %v434
      %v499 = vunpack.c.l.bf16 %v435
      %v500 = vunpack.c.l.bf16 %v436
      %v501 = vunpack.c.l.bf16 %v437
      %v502 = vunpack.c.l.bf16 %v438
      %v503 = vunpack.c.l.bf16 %v439
      %v504 = vunpack.c.l.bf16 %v440
      %v505 = vunpack.c.l.bf16 %v441
      %v506 = vunpack.c.l.bf16 %v442
      %v507 = vunpack.c.l.bf16 %v443
      %v508 = vunpack.c.l.bf16 %v444
      %v509 = vunpack.c.l.bf16 %v445
      %v510 = vunpack.c.l.bf16 %v446
      %v511 = vunpack.c.l.bf16 %v447
      %v512 = vld [vmem:[%s238] sm:$0x1]
      %v513 = vunpack.c.l.bf16 %v512
      %515 = vset.pattern.permute.xlu0 0
      %516 = vperm.xlu0 %515, %v448
      %v517 = vpop.permute.xlu0 %516
      %520 = vset.pattern.permute.xlu0 0
      %521 = vperm.xlu0 %520, %v449
      %v522 = vpop.permute.xlu0 %521
      %525 = vset.pattern.permute.xlu0 0
      %526 = vperm.xlu0 %525, %v450
      %v527 = vpop.permute.xlu0 %526
      %530 = vset.pattern.permute.xlu0 0
      %531 = vperm.xlu0 %530, %v451
      %v532 = vpop.permute.xlu0 %531
      %535 = vset.pattern.permute.xlu0 0
      %536 = vperm.xlu0 %535, %v452
      %v537 = vpop.permute.xlu0 %536
      %540 = vset.pattern.permute.xlu0 0
      %541 = vperm.xlu0 %540, %v453
      %v542 = vpop.permute.xlu0 %541
      %545 = vset.pattern.permute.xlu0 0
      %546 = vperm.xlu0 %545, %v454
      %v547 = vpop.permute.xlu0 %546
      %550 = vset.pattern.permute.xlu0 0
      %551 = vperm.xlu0 %550, %v455
      %v552 = vpop.permute.xlu0 %551
      %555 = vset.pattern.permute.xlu0 0
      %556 = vperm.xlu0 %555, %v456
      %v557 = vpop.permute.xlu0 %556
      %560 = vset.pattern.permute.xlu0 0
      %561 = vperm.xlu0 %560, %v457
      %v562 = vpop.permute.xlu0 %561
      %565 = vset.pattern.permute.xlu0 0
      %566 = vperm.xlu0 %565, %v458
      %v567 = vpop.permute.xlu0 %566
      %570 = vset.pattern.permute.xlu0 0
      %571 = vperm.xlu0 %570, %v459
      %v572 = vpop.permute.xlu0 %571
      %575 = vset.pattern.permute.xlu0 0
      %576 = vperm.xlu0 %575, %v460
      %v577 = vpop.permute.xlu0 %576
      %580 = vset.pattern.permute.xlu0 0
      %581 = vperm.xlu0 %580, %v461
      %v582 = vpop.permute.xlu0 %581
      %585 = vset.pattern.permute.xlu0 0
      %586 = vperm.xlu0 %585, %v462
      %v587 = vpop.permute.xlu0 %586
      %590 = vset.pattern.permute.xlu0 0
      %591 = vperm.xlu0 %590, %v463
      %v592 = vpop.permute.xlu0 %591
      %595 = vset.pattern.permute.xlu0 0
      %596 = vperm.xlu0 %595, %v464
      %v597 = vpop.permute.xlu0 %596
      %600 = vset.pattern.permute.xlu0 0
      %601 = vperm.xlu0 %600, %v465
      %v602 = vpop.permute.xlu0 %601
      %605 = vset.pattern.permute.xlu0 0
      %606 = vperm.xlu0 %605, %v466
      %v607 = vpop.permute.xlu0 %606
      %610 = vset.pattern.permute.xlu0 0
      %611 = vperm.xlu0 %610, %v467
      %v612 = vpop.permute.xlu0 %611
      %615 = vset.pattern.permute.xlu0 0
      %616 = vperm.xlu0 %615, %v468
      %v617 = vpop.permute.xlu0 %616
      %620 = vset.pattern.permute.xlu0 0
      %621 = vperm.xlu0 %620, %v469
      %v622 = vpop.permute.xlu0 %621
      %625 = vset.pattern.permute.xlu0 0
      %626 = vperm.xlu0 %625, %v470
      %v627 = vpop.permute.xlu0 %626
      %630 = vset.pattern.permute.xlu0 0
      %631 = vperm.xlu0 %630, %v471
      %v632 = vpop.permute.xlu0 %631
      %635 = vset.pattern.permute.xlu0 0
      %636 = vperm.xlu0 %635, %v472
      %v637 = vpop.permute.xlu0 %636
      %640 = vset.pattern.permute.xlu0 0
      %641 = vperm.xlu0 %640, %v473
      %v642 = vpop.permute.xlu0 %641
      %645 = vset.pattern.permute.xlu0 0
      %646 = vperm.xlu0 %645, %v474
      %v647 = vpop.permute.xlu0 %646
      %650 = vset.pattern.permute.xlu0 0
      %651 = vperm.xlu0 %650, %v475
      %v652 = vpop.permute.xlu0 %651
      %655 = vset.pattern.permute.xlu0 0
      %656 = vperm.xlu0 %655, %v476
      %v657 = vpop.permute.xlu0 %656
      %660 = vset.pattern.permute.xlu0 0
      %661 = vperm.xlu0 %660, %v477
      %v662 = vpop.permute.xlu0 %661
      %665 = vset.pattern.permute.xlu0 0
      %666 = vperm.xlu0 %665, %v478
      %v667 = vpop.permute.xlu0 %666
      %670 = vset.pattern.permute.xlu0 0
      %671 = vperm.xlu0 %670, %v479
      %v672 = vpop.permute.xlu0 %671
      %675 = vset.pattern.permute.xlu0 0
      %676 = vperm.xlu0 %675, %v480
      %v677 = vpop.permute.xlu0 %676
      %680 = vset.pattern.permute.xlu0 0
      %681 = vperm.xlu0 %680, %v481
      %v682 = vpop.permute.xlu0 %681
      %685 = vset.pattern.permute.xlu0 0
      %686 = vperm.xlu0 %685, %v482
      %v687 = vpop.permute.xlu0 %686
      %690 = vset.pattern.permute.xlu0 0
      %691 = vperm.xlu0 %690, %v483
      %v692 = vpop.permute.xlu0 %691
      %695 = vset.pattern.permute.xlu0 0
      %696 = vperm.xlu0 %695, %v484
      %v697 = vpop.permute.xlu0 %696
      %700 = vset.pattern.permute.xlu0 0
      %701 = vperm.xlu0 %700, %v485
      %v702 = vpop.permute.xlu0 %701
      %705 = vset.pattern.permute.xlu0 0
      %706 = vperm.xlu0 %705, %v486
      %v707 = vpop.permute.xlu0 %706
      %710 = vset.pattern.permute.xlu0 0
      %711 = vperm.xlu0 %710, %v487
      %v712 = vpop.permute.xlu0 %711
      %715 = vset.pattern.permute.xlu0 0
      %716 = vperm.xlu0 %715, %v488
      %v717 = vpop.permute.xlu0 %716
      %720 = vset.pattern.permute.xlu0 0
      %721 = vperm.xlu0 %720, %v489
      %v722 = vpop.permute.xlu0 %721
      %725 = vset.pattern.permute.xlu0 0
      %726 = vperm.xlu0 %725, %v490
      %v727 = vpop.permute.xlu0 %726
      %730 = vset.pattern.permute.xlu0 0
      %731 = vperm.xlu0 %730, %v491
      %v732 = vpop.permute.xlu0 %731
      %735 = vset.pattern.permute.xlu0 0
      %736 = vperm.xlu0 %735, %v492
      %v737 = vpop.permute.xlu0 %736
      %740 = vset.pattern.permute.xlu0 0
      %741 = vperm.xlu0 %740, %v493
      %v742 = vpop.permute.xlu0 %741
      %745 = vset.pattern.permute.xlu0 0
      %746 = vperm.xlu0 %745, %v494
      %v747 = vpop.permute.xlu0 %746
      %750 = vset.pattern.permute.xlu0 0
      %751 = vperm.xlu0 %750, %v495
      %v752 = vpop.permute.xlu0 %751
      %755 = vset.pattern.permute.xlu0 0
      %756 = vperm.xlu0 %755, %v496
      %v757 = vpop.permute.xlu0 %756
      %760 = vset.pattern.permute.xlu0 0
      %761 = vperm.xlu0 %760, %v497
      %v762 = vpop.permute.xlu0 %761
      %765 = vset.pattern.permute.xlu0 0
      %766 = vperm.xlu0 %765, %v498
      %v767 = vpop.permute.xlu0 %766
      %770 = vset.pattern.permute.xlu0 0
      %771 = vperm.xlu0 %770, %v499
      %v772 = vpop.permute.xlu0 %771
      %775 = vset.pattern.permute.xlu0 0
      %776 = vperm.xlu0 %775, %v500
      %v777 = vpop.permute.xlu0 %776
      %780 = vset.pattern.permute.xlu0 0
      %781 = vperm.xlu0 %780, %v501
      %v782 = vpop.permute.xlu0 %781
      %785 = vset.pattern.permute.xlu0 0
      %786 = vperm.xlu0 %785, %v502
      %v787 = vpop.permute.xlu0 %786
      %790 = vset.pattern.permute.xlu0 0
      %791 = vperm.xlu0 %790, %v503
      %v792 = vpop.permute.xlu0 %791
      %795 = vset.pattern.permute.xlu0 0
      %796 = vperm.xlu0 %795, %v504
      %v797 = vpop.permute.xlu0 %796
      %800 = vset.pattern.permute.xlu0 0
      %801 = vperm.xlu0 %800, %v505
      %v802 = vpop.permute.xlu0 %801
      %805 = vset.pattern.permute.xlu0 0
      %806 = vperm.xlu0 %805, %v506
      %v807 = vpop.permute.xlu0 %806
      %810 = vset.pattern.permute.xlu0 0
      %811 = vperm.xlu0 %810, %v507
      %v812 = vpop.permute.xlu0 %811
      %815 = vset.pattern.permute.xlu0 0
      %816 = vperm.xlu0 %815, %v508
      %v817 = vpop.permute.xlu0 %816
      %820 = vset.pattern.permute.xlu0 0
      %821 = vperm.xlu0 %820, %v509
      %v822 = vpop.permute.xlu0 %821
      %825 = vset.pattern.permute.xlu0 0
      %826 = vperm.xlu0 %825, %v510
      %v827 = vpop.permute.xlu0 %826
      %830 = vset.pattern.permute.xlu0 0
      %831 = vperm.xlu0 %830, %v511
      %v832 = vpop.permute.xlu0 %831
      %v834 = vperm.slane %v513, 0
      %v835 = vmul.f32 %v517, %v834
      %v836 = vmul.f32 %v522, %v834
      %v837 = vmul.f32 %v527, %v834
      %v838 = vmul.f32 %v532, %v834
      %v839 = vmul.f32 %v537, %v834
      %v840 = vmul.f32 %v542, %v834
      %v841 = vmul.f32 %v547, %v834
      %v842 = vmul.f32 %v552, %v834
      %v843 = vmul.f32 %v557, %v834
      %v844 = vmul.f32 %v562, %v834
      %v845 = vmul.f32 %v567, %v834
      %v846 = vmul.f32 %v572, %v834
      %v847 = vmul.f32 %v577, %v834
      %v848 = vmul.f32 %v582, %v834
      %v849 = vmul.f32 %v587, %v834
      %v850 = vmul.f32 %v592, %v834
      %v851 = vmul.f32 %v597, %v834
      %v852 = vmul.f32 %v602, %v834
      %v853 = vmul.f32 %v607, %v834
      %v854 = vmul.f32 %v612, %v834
      %v855 = vmul.f32 %v617, %v834
      %v856 = vmul.f32 %v622, %v834
      %v857 = vmul.f32 %v627, %v834
      %v858 = vmul.f32 %v632, %v834
      %v859 = vmul.f32 %v637, %v834
      %v860 = vmul.f32 %v642, %v834
      %v861 = vmul.f32 %v647, %v834
      %v862 = vmul.f32 %v652, %v834
      %v863 = vmul.f32 %v657, %v834
      %v864 = vmul.f32 %v662, %v834
      %v865 = vmul.f32 %v667, %v834
      %v866 = vmul.f32 %v672, %v834
      %v867 = vmul.f32 %v677, %v834
      %v868 = vmul.f32 %v682, %v834
      %v869 = vmul.f32 %v687, %v834
      %v870 = vmul.f32 %v692, %v834
      %v871 = vmul.f32 %v697, %v834
      %v872 = vmul.f32 %v702, %v834
      %v873 = vmul.f32 %v707, %v834
      %v874 = vmul.f32 %v712, %v834
      %v875 = vmul.f32 %v717, %v834
      %v876 = vmul.f32 %v722, %v834
      %v877 = vmul.f32 %v727, %v834
      %v878 = vmul.f32 %v732, %v834
      %v879 = vmul.f32 %v737, %v834
      %v880 = vmul.f32 %v742, %v834
      %v881 = vmul.f32 %v747, %v834
      %v882 = vmul.f32 %v752, %v834
      %v883 = vmul.f32 %v757, %v834
      %v884 = vmul.f32 %v762, %v834
      %v885 = vmul.f32 %v767, %v834
      %v886 = vmul.f32 %v772, %v834
      %v887 = vmul.f32 %v777, %v834
      %v888 = vmul.f32 %v782, %v834
      %v889 = vmul.f32 %v787, %v834
      %v890 = vmul.f32 %v792, %v834
      %v891 = vmul.f32 %v797, %v834
      %v892 = vmul.f32 %v802, %v834
      %v893 = vmul.f32 %v807, %v834
      %v894 = vmul.f32 %v812, %v834
      %v895 = vmul.f32 %v817, %v834
      %v896 = vmul.f32 %v822, %v834
      %v897 = vmul.f32 %v827, %v834
      %v898 = vmul.f32 %v832, %v834
      %v899 = vadd.f32 %v320, %v835
      %v900 = vadd.f32 %v321, %v836
      %v901 = vadd.f32 %v322, %v837
      %v902 = vadd.f32 %v323, %v838
      %v903 = vadd.f32 %v324, %v839
      %v904 = vadd.f32 %v325, %v840
      %v905 = vadd.f32 %v326, %v841
      %v906 = vadd.f32 %v327, %v842
      %v907 = vadd.f32 %v328, %v843
      %v908 = vadd.f32 %v329, %v844
      %v909 = vadd.f32 %v330, %v845
      %v910 = vadd.f32 %v331, %v846
      %v911 = vadd.f32 %v332, %v847
      %v912 = vadd.f32 %v333, %v848
      %v913 = vadd.f32 %v334, %v849
      %v914 = vadd.f32 %v335, %v850
      %v915 = vadd.f32 %v336, %v851
      %v916 = vadd.f32 %v337, %v852
      %v917 = vadd.f32 %v338, %v853
      %v918 = vadd.f32 %v339, %v854
      %v919 = vadd.f32 %v340, %v855
      %v920 = vadd.f32 %v341, %v856
      %v921 = vadd.f32 %v342, %v857
      %v922 = vadd.f32 %v343, %v858
      %v923 = vadd.f32 %v344, %v859
      %v924 = vadd.f32 %v345, %v860
      %v925 = vadd.f32 %v346, %v861
      %v926 = vadd.f32 %v347, %v862
      %v927 = vadd.f32 %v348, %v863
      %v928 = vadd.f32 %v349, %v864
      %v929 = vadd.f32 %v350, %v865
      %v930 = vadd.f32 %v351, %v866
      %v931 = vadd.f32 %v352, %v867
      %v932 = vadd.f32 %v353, %v868
      %v933 = vadd.f32 %v354, %v869
      %v934 = vadd.f32 %v355, %v870
      %v935 = vadd.f32 %v356, %v871
      %v936 = vadd.f32 %v357, %v872
      %v937 = vadd.f32 %v358, %v873
      %v938 = vadd.f32 %v359, %v874
      %v939 = vadd.f32 %v360, %v875
      %v940 = vadd.f32 %v361, %v876
      %v941 = vadd.f32 %v362, %v877
      %v942 = vadd.f32 %v363, %v878
      %v943 = vadd.f32 %v364, %v879
      %v944 = vadd.f32 %v365, %v880
      %v945 = vadd.f32 %v366, %v881
      %v946 = vadd.f32 %v367, %v882
      %v947 = vadd.f32 %v368, %v883
      %v948 = vadd.f32 %v369, %v884
      %v949 = vadd.f32 %v370, %v885
      %v950 = vadd.f32 %v371, %v886
      %v951 = vadd.f32 %v372, %v887
      %v952 = vadd.f32 %v373, %v888
      %v953 = vadd.f32 %v374, %v889
      %v954 = vadd.f32 %v375, %v890
      %v955 = vadd.f32 %v376, %v891
      %v956 = vadd.f32 %v377, %v892
      %v957 = vadd.f32 %v378, %v893
      %v958 = vadd.f32 %v379, %v894
      %v959 = vadd.f32 %v380, %v895
      %v960 = vadd.f32 %v381, %v896
      %v961 = vadd.f32 %v382, %v897
      %v962 = vadd.f32 %v383, %v898
      %vm963 = vcmask 64512
      %964 = vst.msk [vmem:[#allocation2] sm:$0xff] %vm963, %v899
      %965 = vst.msk [vmem:[#allocation2 + $0x8] sm:$0xff] %vm963, %v900
      %966 = vst.msk [vmem:[#allocation2 + $0x10] sm:$0xff] %vm963, %v901
      %967 = vst.msk [vmem:[#allocation2 + $0x18] sm:$0xff] %vm963, %v902
      %968 = vst.msk [vmem:[#allocation2 + $0x20] sm:$0xff] %vm963, %v903
      %969 = vst.msk [vmem:[#allocation2 + $0x28] sm:$0xff] %vm963, %v904
      %970 = vst.msk [vmem:[#allocation2 + $0x30] sm:$0xff] %vm963, %v905
      %971 = vst.msk [vmem:[#allocation2 + $0x38] sm:$0xff] %vm963, %v906
      %972 = vst.msk [vmem:[#allocation2 + $0x40] sm:$0xff] %vm963, %v907
      %973 = vst.msk [vmem:[#allocation2 + $0x48] sm:$0xff] %vm963, %v908
      %974 = vst.msk [vmem:[#allocation2 + $0x50] sm:$0xff] %vm963, %v909
      %975 = vst.msk [vmem:[#allocation2 + $0x58] sm:$0xff] %vm963, %v910
      %976 = vst.msk [vmem:[#allocation2 + $0x60] sm:$0xff] %vm963, %v911
      %977 = vst.msk [vmem:[#allocation2 + $0x68] sm:$0xff] %vm963, %v912
      %978 = vst.msk [vmem:[#allocation2 + $0x70] sm:$0xff] %vm963, %v913
      %979 = vst.msk [vmem:[#allocation2 + $0x78] sm:$0xff] %vm963, %v914
      %980 = vst.msk [vmem:[#allocation2 + $0x80] sm:$0xff] %vm963, %v915
      %981 = vst.msk [vmem:[#allocation2 + $0x88] sm:$0xff] %vm963, %v916
      %982 = vst.msk [vmem:[#allocation2 + $0x90] sm:$0xff] %vm963, %v917
      %983 = vst.msk [vmem:[#allocation2 + $0x98] sm:$0xff] %vm963, %v918
      %984 = vst.msk [vmem:[#allocation2 + $0xa0] sm:$0xff] %vm963, %v919
      %985 = vst.msk [vmem:[#allocation2 + $0xa8] sm:$0xff] %vm963, %v920
      %986 = vst.msk [vmem:[#allocation2 + $0xb0] sm:$0xff] %vm963, %v921
      %987 = vst.msk [vmem:[#allocation2 + $0xb8] sm:$0xff] %vm963, %v922
      %988 = vst.msk [vmem:[#allocation2 + $0xc0] sm:$0xff] %vm963, %v923
      %989 = vst.msk [vmem:[#allocation2 + $0xc8] sm:$0xff] %vm963, %v924
      %990 = vst.msk [vmem:[#allocation2 + $0xd0] sm:$0xff] %vm963, %v925
      %991 = vst.msk [vmem:[#allocation2 + $0xd8] sm:$0xff] %vm963, %v926
      %992 = vst.msk [vmem:[#allocation2 + $0xe0] sm:$0xff] %vm963, %v927
      %993 = vst.msk [vmem:[#allocation2 + $0xe8] sm:$0xff] %vm963, %v928
      %994 = vst.msk [vmem:[#allocation2 + $0xf0] sm:$0xff] %vm963, %v929
      %995 = vst.msk [vmem:[#allocation2 + $0xf8] sm:$0xff] %vm963, %v930
      %996 = vst.msk [vmem:[#allocation2 + $0x100] sm:$0xff] %vm963, %v931
      %997 = vst.msk [vmem:[#allocation2 + $0x108] sm:$0xff] %vm963, %v932
      %998 = vst.msk [vmem:[#allocation2 + $0x110] sm:$0xff] %vm963, %v933
      %999 = vst.msk [vmem:[#allocation2 + $0x118] sm:$0xff] %vm963, %v934
      %1000 = vst.msk [vmem:[#allocation2 + $0x120] sm:$0xff] %vm963, %v935
      %1001 = vst.msk [vmem:[#allocation2 + $0x128] sm:$0xff] %vm963, %v936
      %1002 = vst.msk [vmem:[#allocation2 + $0x130] sm:$0xff] %vm963, %v937
      %1003 = vst.msk [vmem:[#allocation2 + $0x138] sm:$0xff] %vm963, %v938
      %1004 = vst.msk [vmem:[#allocation2 + $0x140] sm:$0xff] %vm963, %v939
      %1005 = vst.msk [vmem:[#allocation2 + $0x148] sm:$0xff] %vm963, %v940
      %1006 = vst.msk [vmem:[#allocation2 + $0x150] sm:$0xff] %vm963, %v941
      %1007 = vst.msk [vmem:[#allocation2 + $0x158] sm:$0xff] %vm963, %v942
      %1008 = vst.msk [vmem:[#allocation2 + $0x160] sm:$0xff] %vm963, %v943
      %1009 = vst.msk [vmem:[#allocation2 + $0x168] sm:$0xff] %vm963, %v944
      %1010 = vst.msk [vmem:[#allocation2 + $0x170] sm:$0xff] %vm963, %v945
      %1011 = vst.msk [vmem:[#allocation2 + $0x178] sm:$0xff] %vm963, %v946
      %1012 = vst.msk [vmem:[#allocation2 + $0x180] sm:$0xff] %vm963, %v947
      %1013 = vst.msk [vmem:[#allocation2 + $0x188] sm:$0xff] %vm963, %v948
      %1014 = vst.msk [vmem:[#allocation2 + $0x190] sm:$0xff] %vm963, %v949
      %1015 = vst.msk [vmem:[#allocation2 + $0x198] sm:$0xff] %vm963, %v950
      %1016 = vst.msk [vmem:[#allocation2 + $0x1a0] sm:$0xff] %vm963, %v951
      %1017 = vst.msk [vmem:[#allocation2 + $0x1a8] sm:$0xff] %vm963, %v952
      %1018 = vst.msk [vmem:[#allocation2 + $0x1b0] sm:$0xff] %vm963, %v953
      %1019 = vst.msk [vmem:[#allocation2 + $0x1b8] sm:$0xff] %vm963, %v954
      %1020 = vst.msk [vmem:[#allocation2 + $0x1c0] sm:$0xff] %vm963, %v955
      %1021 = vst.msk [vmem:[#allocation2 + $0x1c8] sm:$0xff] %vm963, %v956
      %1022 = vst.msk [vmem:[#allocation2 + $0x1d0] sm:$0xff] %vm963, %v957
      %1023 = vst.msk [vmem:[#allocation2 + $0x1d8] sm:$0xff] %vm963, %v958
      %1024 = vst.msk [vmem:[#allocation2 + $0x1e0] sm:$0xff] %vm963, %v959
      %1025 = vst.msk [vmem:[#allocation2 + $0x1e8] sm:$0xff] %vm963, %v960
      %1026 = vst.msk [vmem:[#allocation2 + $0x1f0] sm:$0xff] %vm963, %v961
      %1027 = vst.msk [vmem:[#allocation2 + $0x1f8] sm:$0xff] %vm963, %v962
      // Predicated region
      $region37: #{tpu_custom_call.1} parent=31 // pred_check
        %p1028 = pneg %p251
      $region38: #{tpu_custom_call.1} parent=31 // pred_check_branch
        %1030 = sbr.rel (%p1028) target = $region40
      $region39: #{tpu_custom_call.1} parent=31 // pred_region
        %v1031 = vld [vmem:[#allocation2] sm:$0xff]
        %v1032 = vld [vmem:[#allocation2 + $0x8] sm:$0xff]
        %v1033 = vld [vmem:[#allocation2 + $0x10] sm:$0xff]
        %v1034 = vld [vmem:[#allocation2 + $0x18] sm:$0xff]
        %v1035 = vld [vmem:[#allocation2 + $0x20] sm:$0xff]
        %v1036 = vld [vmem:[#allocation2 + $0x28] sm:$0xff]
        %v1037 = vld [vmem:[#allocation2 + $0x30] sm:$0xff]
        %v1038 = vld [vmem:[#allocation2 + $0x38] sm:$0xff]
        %v1039 = vld [vmem:[#allocation2 + $0x40] sm:$0xff]
        %v1040 = vld [vmem:[#allocation2 + $0x48] sm:$0xff]
        %v1041 = vld [vmem:[#allocation2 + $0x50] sm:$0xff]
        %v1042 = vld [vmem:[#allocation2 + $0x58] sm:$0xff]
        %v1043 = vld [vmem:[#allocation2 + $0x60] sm:$0xff]
        %v1044 = vld [vmem:[#allocation2 + $0x68] sm:$0xff]
        %v1045 = vld [vmem:[#allocation2 + $0x70] sm:$0xff]
        %v1046 = vld [vmem:[#allocation2 + $0x78] sm:$0xff]
        %v1047 = vld [vmem:[#allocation2 + $0x80] sm:$0xff]
        %v1048 = vld [vmem:[#allocation2 + $0x88] sm:$0xff]
        %v1049 = vld [vmem:[#allocation2 + $0x90] sm:$0xff]
        %v1050 = vld [vmem:[#allocation2 + $0x98] sm:$0xff]
        %v1051 = vld [vmem:[#allocation2 + $0xa0] sm:$0xff]
        %v1052 = vld [vmem:[#allocation2 + $0xa8] sm:$0xff]
        %v1053 = vld [vmem:[#allocation2 + $0xb0] sm:$0xff]
        %v1054 = vld [vmem:[#allocation2 + $0xb8] sm:$0xff]
        %v1055 = vld [vmem:[#allocation2 + $0xc0] sm:$0xff]
        %v1056 = vld [vmem:[#allocation2 + $0xc8] sm:$0xff]
        %v1057 = vld [vmem:[#allocation2 + $0xd0] sm:$0xff]
        %v1058 = vld [vmem:[#allocation2 + $0xd8] sm:$0xff]
        %v1059 = vld [vmem:[#allocation2 + $0xe0] sm:$0xff]
        %v1060 = vld [vmem:[#allocation2 + $0xe8] sm:$0xff]
        %v1061 = vld [vmem:[#allocation2 + $0xf0] sm:$0xff]
        %v1062 = vld [vmem:[#allocation2 + $0xf8] sm:$0xff]
        %v1063 = vld [vmem:[#allocation2 + $0x100] sm:$0xff]
        %v1064 = vld [vmem:[#allocation2 + $0x108] sm:$0xff]
        %v1065 = vld [vmem:[#allocation2 + $0x110] sm:$0xff]
        %v1066 = vld [vmem:[#allocation2 + $0x118] sm:$0xff]
        %v1067 = vld [vmem:[#allocation2 + $0x120] sm:$0xff]
        %v1068 = vld [vmem:[#allocation2 + $0x128] sm:$0xff]
        %v1069 = vld [vmem:[#allocation2 + $0x130] sm:$0xff]
        %v1070 = vld [vmem:[#allocation2 + $0x138] sm:$0xff]
        %v1071 = vld [vmem:[#allocation2 + $0x140] sm:$0xff]
        %v1072 = vld [vmem:[#allocation2 + $0x148] sm:$0xff]
        %v1073 = vld [vmem:[#allocation2 + $0x150] sm:$0xff]
        %v1074 = vld [vmem:[#allocation2 + $0x158] sm:$0xff]
        %v1075 = vld [vmem:[#allocation2 + $0x160] sm:$0xff]
        %v1076 = vld [vmem:[#allocation2 + $0x168] sm:$0xff]
        %v1077 = vld [vmem:[#allocation2 + $0x170] sm:$0xff]
        %v1078 = vld [vmem:[#allocation2 + $0x178] sm:$0xff]
        %v1079 = vld [vmem:[#allocation2 + $0x180] sm:$0xff]
        %v1080 = vld [vmem:[#allocation2 + $0x188] sm:$0xff]
        %v1081 = vld [vmem:[#allocation2 + $0x190] sm:$0xff]
        %v1082 = vld [vmem:[#allocation2 + $0x198] sm:$0xff]
        %v1083 = vld [vmem:[#allocation2 + $0x1a0] sm:$0xff]
        %v1084 = vld [vmem:[#allocation2 + $0x1a8] sm:$0xff]
        %v1085 = vld [vmem:[#allocation2 + $0x1b0] sm:$0xff]
        %v1086 = vld [vmem:[#allocation2 + $0x1b8] sm:$0xff]
        %v1087 = vld [vmem:[#allocation2 + $0x1c0] sm:$0xff]
        %v1088 = vld [vmem:[#allocation2 + $0x1c8] sm:$0xff]
        %v1089 = vld [vmem:[#allocation2 + $0x1d0] sm:$0xff]
        %v1090 = vld [vmem:[#allocation2 + $0x1d8] sm:$0xff]
        %v1091 = vld [vmem:[#allocation2 + $0x1e0] sm:$0xff]
        %v1092 = vld [vmem:[#allocation2 + $0x1e8] sm:$0xff]
        %v1093 = vld [vmem:[#allocation2 + $0x1f0] sm:$0xff]
        %v1094 = vld [vmem:[#allocation2 + $0x1f8] sm:$0xff]
        %v1095 = vld [vmem:[%s241] sm:$0x1]
        %v1097 = vperm.slane %v1095, 0
        %v1099 = vadd.f32 %v1031, %v1097
        %v1100 = vadd.f32 %v1032, %v1097
        %v1101 = vadd.f32 %v1033, %v1097
        %v1102 = vadd.f32 %v1034, %v1097
        %v1103 = vadd.f32 %v1035, %v1097
        %v1104 = vadd.f32 %v1036, %v1097
        %v1105 = vadd.f32 %v1037, %v1097
        %v1106 = vadd.f32 %v1038, %v1097
        %v1107 = vadd.f32 %v1039, %v1097
        %v1108 = vadd.f32 %v1040, %v1097
        %v1109 = vadd.f32 %v1041, %v1097
        %v1110 = vadd.f32 %v1042, %v1097
        %v1111 = vadd.f32 %v1043, %v1097
        %v1112 = vadd.f32 %v1044, %v1097
        %v1113 = vadd.f32 %v1045, %v1097
        %v1114 = vadd.f32 %v1046, %v1097
        %v1115 = vadd.f32 %v1047, %v1097
        %v1116 = vadd.f32 %v1048, %v1097
        %v1117 = vadd.f32 %v1049, %v1097
        %v1118 = vadd.f32 %v1050, %v1097
        %v1119 = vadd.f32 %v1051, %v1097
        %v1120 = vadd.f32 %v1052, %v1097
        %v1121 = vadd.f32 %v1053, %v1097
        %v1122 = vadd.f32 %v1054, %v1097
        %v1123 = vadd.f32 %v1055, %v1097
        %v1124 = vadd.f32 %v1056, %v1097
        %v1125 = vadd.f32 %v1057, %v1097
        %v1126 = vadd.f32 %v1058, %v1097
        %v1127 = vadd.f32 %v1059, %v1097
        %v1128 = vadd.f32 %v1060, %v1097
        %v1129 = vadd.f32 %v1061, %v1097
        %v1130 = vadd.f32 %v1062, %v1097
        %v1131 = vadd.f32 %v1063, %v1097
        %v1132 = vadd.f32 %v1064, %v1097
        %v1133 = vadd.f32 %v1065, %v1097
        %v1134 = vadd.f32 %v1066, %v1097
        %v1135 = vadd.f32 %v1067, %v1097
        %v1136 = vadd.f32 %v1068, %v1097
        %v1137 = vadd.f32 %v1069, %v1097
        %v1138 = vadd.f32 %v1070, %v1097
        %v1139 = vadd.f32 %v1071, %v1097
        %v1140 = vadd.f32 %v1072, %v1097
        %v1141 = vadd.f32 %v1073, %v1097
        %v1142 = vadd.f32 %v1074, %v1097
        %v1143 = vadd.f32 %v1075, %v1097
        %v1144 = vadd.f32 %v1076, %v1097
        %v1145 = vadd.f32 %v1077, %v1097
        %v1146 = vadd.f32 %v1078, %v1097
        %v1147 = vadd.f32 %v1079, %v1097
        %v1148 = vadd.f32 %v1080, %v1097
        %v1149 = vadd.f32 %v1081, %v1097
        %v1150 = vadd.f32 %v1082, %v1097
        %v1151 = vadd.f32 %v1083, %v1097
        %v1152 = vadd.f32 %v1084, %v1097
        %v1153 = vadd.f32 %v1085, %v1097
        %v1154 = vadd.f32 %v1086, %v1097
        %v1155 = vadd.f32 %v1087, %v1097
        %v1156 = vadd.f32 %v1088, %v1097
        %v1157 = vadd.f32 %v1089, %v1097
        %v1158 = vadd.f32 %v1090, %v1097
        %v1159 = vadd.f32 %v1091, %v1097
        %v1160 = vadd.f32 %v1092, %v1097
        %v1161 = vadd.f32 %v1093, %v1097
        %v1162 = vadd.f32 %v1094, %v1097
        %v1163 = vxor.u32 %v1099, 2147483648
        %v1164 = vxor.u32 %v1100, 2147483648
        %v1165 = vxor.u32 %v1101, 2147483648
        %v1166 = vxor.u32 %v1102, 2147483648
        %v1167 = vxor.u32 %v1103, 2147483648
        %v1168 = vxor.u32 %v1104, 2147483648
        %v1169 = vxor.u32 %v1105, 2147483648
        %v1170 = vxor.u32 %v1106, 2147483648
        %v1171 = vxor.u32 %v1107, 2147483648
        %v1172 = vxor.u32 %v1108, 2147483648
        %v1173 = vxor.u32 %v1109, 2147483648
        %v1174 = vxor.u32 %v1110, 2147483648
        %v1175 = vxor.u32 %v1111, 2147483648
        %v1176 = vxor.u32 %v1112, 2147483648
        %v1177 = vxor.u32 %v1113, 2147483648
        %v1178 = vxor.u32 %v1114, 2147483648
        %v1179 = vxor.u32 %v1115, 2147483648
        %v1180 = vxor.u32 %v1116, 2147483648
        %v1181 = vxor.u32 %v1117, 2147483648
        %v1182 = vxor.u32 %v1118, 2147483648
        %v1183 = vxor.u32 %v1119, 2147483648
        %v1184 = vxor.u32 %v1120, 2147483648
        %v1185 = vxor.u32 %v1121, 2147483648
        %v1186 = vxor.u32 %v1122, 2147483648
        %v1187 = vxor.u32 %v1123, 2147483648
        %v1188 = vxor.u32 %v1124, 2147483648
        %v1189 = vxor.u32 %v1125, 2147483648
        %v1190 = vxor.u32 %v1126, 2147483648
        %v1191 = vxor.u32 %v1127, 2147483648
        %v1192 = vxor.u32 %v1128, 2147483648
        %v1193 = vxor.u32 %v1129, 2147483648
        %v1194 = vxor.u32 %v1130, 2147483648
        %v1195 = vxor.u32 %v1131, 2147483648
        %v1196 = vxor.u32 %v1132, 2147483648
        %v1197 = vxor.u32 %v1133, 2147483648
        %v1198 = vxor.u32 %v1134, 2147483648
        %v1199 = vxor.u32 %v1135, 2147483648
        %v1200 = vxor.u32 %v1136, 2147483648
        %v1201 = vxor.u32 %v1137, 2147483648
        %v1202 = vxor.u32 %v1138, 2147483648
        %v1203 = vxor.u32 %v1139, 2147483648
        %v1204 = vxor.u32 %v1140, 2147483648
        %v1205 = vxor.u32 %v1141, 2147483648
        %v1206 = vxor.u32 %v1142, 2147483648
        %v1207 = vxor.u32 %v1143, 2147483648
        %v1208 = vxor.u32 %v1144, 2147483648
        %v1209 = vxor.u32 %v1145, 2147483648
        %v1210 = vxor.u32 %v1146, 2147483648
        %v1211 = vxor.u32 %v1147, 2147483648
        %v1212 = vxor.u32 %v1148, 2147483648
        %v1213 = vxor.u32 %v1149, 2147483648
        %v1214 = vxor.u32 %v1150, 2147483648
        %v1215 = vxor.u32 %v1151, 2147483648
        %v1216 = vxor.u32 %v1152, 2147483648
        %v1217 = vxor.u32 %v1153, 2147483648
        %v1218 = vxor.u32 %v1154, 2147483648
        %v1219 = vxor.u32 %v1155, 2147483648
        %v1220 = vxor.u32 %v1156, 2147483648
        %v1221 = vxor.u32 %v1157, 2147483648
        %v1222 = vxor.u32 %v1158, 2147483648
        %v1223 = vxor.u32 %v1159, 2147483648
        %v1224 = vxor.u32 %v1160, 2147483648
        %v1225 = vxor.u32 %v1161, 2147483648
        %v1226 = vxor.u32 %v1162, 2147483648
        %v1227 = vmul.f32 %v1163, 1.442695
        %v1228 = vpow.pop %v1227
        %v1229 = vmul.f32 %v1164, 1.442695
        %v1230 = vpow.pop %v1229
        %v1231 = vmul.f32 %v1165, 1.442695
        %v1232 = vpow.pop %v1231
        %v1233 = vmul.f32 %v1166, 1.442695
        %v1234 = vpow.pop %v1233
        %v1235 = vmul.f32 %v1167, 1.442695
        %v1236 = vpow.pop %v1235
        %v1237 = vmul.f32 %v1168, 1.442695
        %v1238 = vpow.pop %v1237
        %v1239 = vmul.f32 %v1169, 1.442695
        %v1240 = vpow.pop %v1239
        %v1241 = vmul.f32 %v1170, 1.442695
        %v1242 = vpow.pop %v1241
        %v1243 = vmul.f32 %v1171, 1.442695
        %v1244 = vpow.pop %v1243
        %v1245 = vmul.f32 %v1172, 1.442695
        %v1246 = vpow.pop %v1245
        %v1247 = vmul.f32 %v1173, 1.442695
        %v1248 = vpow.pop %v1247
        %v1249 = vmul.f32 %v1174, 1.442695
        %v1250 = vpow.pop %v1249
        %v1251 = vmul.f32 %v1175, 1.442695
        %v1252 = vpow.pop %v1251
        %v1253 = vmul.f32 %v1176, 1.442695
        %v1254 = vpow.pop %v1253
        %v1255 = vmul.f32 %v1177, 1.442695
        %v1256 = vpow.pop %v1255
        %v1257 = vmul.f32 %v1178, 1.442695
        %v1258 = vpow.pop %v1257
        %v1259 = vmul.f32 %v1179, 1.442695
        %v1260 = vpow.pop %v1259
        %v1261 = vmul.f32 %v1180, 1.442695
        %v1262 = vpow.pop %v1261
        %v1263 = vmul.f32 %v1181, 1.442695
        %v1264 = vpow.pop %v1263
        %v1265 = vmul.f32 %v1182, 1.442695
        %v1266 = vpow.pop %v1265
        %v1267 = vmul.f32 %v1183, 1.442695
        %v1268 = vpow.pop %v1267
        %v1269 = vmul.f32 %v1184, 1.442695
        %v1270 = vpow.pop %v1269
        %v1271 = vmul.f32 %v1185, 1.442695
        %v1272 = vpow.pop %v1271
        %v1273 = vmul.f32 %v1186, 1.442695
        %v1274 = vpow.pop %v1273
        %v1275 = vmul.f32 %v1187, 1.442695
        %v1276 = vpow.pop %v1275
        %v1277 = vmul.f32 %v1188, 1.442695
        %v1278 = vpow.pop %v1277
        %v1279 = vmul.f32 %v1189, 1.442695
        %v1280 = vpow.pop %v1279
        %v1281 = vmul.f32 %v1190, 1.442695
        %v1282 = vpow.pop %v1281
        %v1283 = vmul.f32 %v1191, 1.442695
        %v1284 = vpow.pop %v1283
        %v1285 = vmul.f32 %v1192, 1.442695
        %v1286 = vpow.pop %v1285
        %v1287 = vmul.f32 %v1193, 1.442695
        %v1288 = vpow.pop %v1287
        %v1289 = vmul.f32 %v1194, 1.442695
        %v1290 = vpow.pop %v1289
        %v1291 = vmul.f32 %v1195, 1.442695
        %v1292 = vpow.pop %v1291
        %v1293 = vmul.f32 %v1196, 1.442695
        %v1294 = vpow.pop %v1293
        %v1295 = vmul.f32 %v1197, 1.442695
        %v1296 = vpow.pop %v1295
        %v1297 = vmul.f32 %v1198, 1.442695
        %v1298 = vpow.pop %v1297
        %v1299 = vmul.f32 %v1199, 1.442695
        %v1300 = vpow.pop %v1299
        %v1301 = vmul.f32 %v1200, 1.442695
        %v1302 = vpow.pop %v1301
        %v1303 = vmul.f32 %v1201, 1.442695
        %v1304 = vpow.pop %v1303
        %v1305 = vmul.f32 %v1202, 1.442695
        %v1306 = vpow.pop %v1305
        %v1307 = vmul.f32 %v1203, 1.442695
        %v1308 = vpow.pop %v1307
        %v1309 = vmul.f32 %v1204, 1.442695
        %v1310 = vpow.pop %v1309
        %v1311 = vmul.f32 %v1205, 1.442695
        %v1312 = vpow.pop %v1311
        %v1313 = vmul.f32 %v1206, 1.442695
        %v1314 = vpow.pop %v1313
        %v1315 = vmul.f32 %v1207, 1.442695
        %v1316 = vpow.pop %v1315
        %v1317 = vmul.f32 %v1208, 1.442695
        %v1318 = vpow.pop %v1317
        %v1319 = vmul.f32 %v1209, 1.442695
        %v1320 = vpow.pop %v1319
        %v1321 = vmul.f32 %v1210, 1.442695
        %v1322 = vpow.pop %v1321
        %v1323 = vmul.f32 %v1211, 1.442695
        %v1324 = vpow.pop %v1323
        %v1325 = vmul.f32 %v1212, 1.442695
        %v1326 = vpow.pop %v1325
        %v1327 = vmul.f32 %v1213, 1.442695
        %v1328 = vpow.pop %v1327
        %v1329 = vmul.f32 %v1214, 1.442695
        %v1330 = vpow.pop %v1329
        %v1331 = vmul.f32 %v1215, 1.442695
        %v1332 = vpow.pop %v1331
        %v1333 = vmul.f32 %v1216, 1.442695
        %v1334 = vpow.pop %v1333
        %v1335 = vmul.f32 %v1217, 1.442695
        %v1336 = vpow.pop %v1335
        %v1337 = vmul.f32 %v1218, 1.442695
        %v1338 = vpow.pop %v1337
        %v1339 = vmul.f32 %v1219, 1.442695
        %v1340 = vpow.pop %v1339
        %v1341 = vmul.f32 %v1220, 1.442695
        %v1342 = vpow.pop %v1341
        %v1343 = vmul.f32 %v1221, 1.442695
        %v1344 = vpow.pop %v1343
        %v1345 = vmul.f32 %v1222, 1.442695
        %v1346 = vpow.pop %v1345
        %v1347 = vmul.f32 %v1223, 1.442695
        %v1348 = vpow.pop %v1347
        %v1349 = vmul.f32 %v1224, 1.442695
        %v1350 = vpow.pop %v1349
        %v1351 = vmul.f32 %v1225, 1.442695
        %v1352 = vpow.pop %v1351
        %v1353 = vmul.f32 %v1226, 1.442695
        %v1354 = vpow.pop %v1353
        %v1355 = vadd.f32 %v1228, 1.0
        %v1356 = vadd.f32 %v1230, 1.0
        %v1357 = vadd.f32 %v1232, 1.0
        %v1358 = vadd.f32 %v1234, 1.0
        %v1359 = vadd.f32 %v1236, 1.0
        %v1360 = vadd.f32 %v1238, 1.0
        %v1361 = vadd.f32 %v1240, 1.0
        %v1362 = vadd.f32 %v1242, 1.0
        %v1363 = vadd.f32 %v1244, 1.0
        %v1364 = vadd.f32 %v1246, 1.0
        %v1365 = vadd.f32 %v1248, 1.0
        %v1366 = vadd.f32 %v1250, 1.0
        %v1367 = vadd.f32 %v1252, 1.0
        %v1368 = vadd.f32 %v1254, 1.0
        %v1369 = vadd.f32 %v1256, 1.0
        %v1370 = vadd.f32 %v1258, 1.0
        %v1371 = vadd.f32 %v1260, 1.0
        %v1372 = vadd.f32 %v1262, 1.0
        %v1373 = vadd.f32 %v1264, 1.0
        %v1374 = vadd.f32 %v1266, 1.0
        %v1375 = vadd.f32 %v1268, 1.0
        %v1376 = vadd.f32 %v1270, 1.0
        %v1377 = vadd.f32 %v1272, 1.0
        %v1378 = vadd.f32 %v1274, 1.0
        %v1379 = vadd.f32 %v1276, 1.0
        %v1380 = vadd.f32 %v1278, 1.0
        %v1381 = vadd.f32 %v1280, 1.0
        %v1382 = vadd.f32 %v1282, 1.0
        %v1383 = vadd.f32 %v1284, 1.0
        %v1384 = vadd.f32 %v1286, 1.0
        %v1385 = vadd.f32 %v1288, 1.0
        %v1386 = vadd.f32 %v1290, 1.0
        %v1387 = vadd.f32 %v1292, 1.0
        %v1388 = vadd.f32 %v1294, 1.0
        %v1389 = vadd.f32 %v1296, 1.0
        %v1390 = vadd.f32 %v1298, 1.0
        %v1391 = vadd.f32 %v1300, 1.0
        %v1392 = vadd.f32 %v1302, 1.0
        %v1393 = vadd.f32 %v1304, 1.0
        %v1394 = vadd.f32 %v1306, 1.0
        %v1395 = vadd.f32 %v1308, 1.0
        %v1396 = vadd.f32 %v1310, 1.0
        %v1397 = vadd.f32 %v1312, 1.0
        %v1398 = vadd.f32 %v1314, 1.0
        %v1399 = vadd.f32 %v1316, 1.0
        %v1400 = vadd.f32 %v1318, 1.0
        %v1401 = vadd.f32 %v1320, 1.0
        %v1402 = vadd.f32 %v1322, 1.0
        %v1403 = vadd.f32 %v1324, 1.0
        %v1404 = vadd.f32 %v1326, 1.0
        %v1405 = vadd.f32 %v1328, 1.0
        %v1406 = vadd.f32 %v1330, 1.0
        %v1407 = vadd.f32 %v1332, 1.0
        %v1408 = vadd.f32 %v1334, 1.0
        %v1409 = vadd.f32 %v1336, 1.0
        %v1410 = vadd.f32 %v1338, 1.0
        %v1411 = vadd.f32 %v1340, 1.0
        %v1412 = vadd.f32 %v1342, 1.0
        %v1413 = vadd.f32 %v1344, 1.0
        %v1414 = vadd.f32 %v1346, 1.0
        %v1415 = vadd.f32 %v1348, 1.0
        %v1416 = vadd.f32 %v1350, 1.0
        %v1417 = vadd.f32 %v1352, 1.0
        %v1418 = vadd.f32 %v1354, 1.0
        %v1419 = vrcp.pop %v1355
        %v1420 = vmul.f32 %v1355, %v1419
        %v1421 = vsub.f32 1.0, %v1420
        %v1422 = vmul.f32 %v1419, %v1421
        %v1423 = vadd.f32 %v1419, %v1422
        %vm1424 = vweird.f32 %v1355
        %vm1425 = vweird.f32 %v1419
        %vm1426 = vmor %vm1424, %vm1425
        %v1427 = vsel %vm1426, %v1419, %v1423
        %v1428 = vand.u32 2147483647, %v1355
        %vm1429 = vcmp.eq.f32.partialorder %v1428, 8.507059e+37
        %v1430 = vand.u32 %v1355, 2147483648
        %v1431 = vor.u32 1.1754944e-38, %v1430
        %v1432 = vsel %vm1429, %v1431, %v1427
        %v1433 = vmul.f32 1.0, %v1432
        %v1434 = vrcp.pop %v1356
        %v1435 = vmul.f32 %v1356, %v1434
        %v1436 = vsub.f32 1.0, %v1435
        %v1437 = vmul.f32 %v1434, %v1436
        %v1438 = vadd.f32 %v1434, %v1437
        %vm1439 = vweird.f32 %v1356
        %vm1440 = vweird.f32 %v1434
        %vm1441 = vmor %vm1439, %vm1440
        %v1442 = vsel %vm1441, %v1434, %v1438
        %v1443 = vand.u32 2147483647, %v1356
        %vm1444 = vcmp.eq.f32.partialorder %v1443, 8.507059e+37
        %v1445 = vand.u32 %v1356, 2147483648
        %v1446 = vor.u32 1.1754944e-38, %v1445
        %v1447 = vsel %vm1444, %v1446, %v1442
        %v1448 = vmul.f32 1.0, %v1447
        %v1449 = vrcp.pop %v1357
        %v1450 = vmul.f32 %v1357, %v1449
        %v1451 = vsub.f32 1.0, %v1450
        %v1452 = vmul.f32 %v1449, %v1451
        %v1453 = vadd.f32 %v1449, %v1452
        %vm1454 = vweird.f32 %v1357
        %vm1455 = vweird.f32 %v1449
        %vm1456 = vmor %vm1454, %vm1455
        %v1457 = vsel %vm1456, %v1449, %v1453
        %v1458 = vand.u32 2147483647, %v1357
        %vm1459 = vcmp.eq.f32.partialorder %v1458, 8.507059e+37
        %v1460 = vand.u32 %v1357, 2147483648
        %v1461 = vor.u32 1.1754944e-38, %v1460
        %v1462 = vsel %vm1459, %v1461, %v1457
        %v1463 = vmul.f32 1.0, %v1462
        %v1464 = vrcp.pop %v1358
        %v1465 = vmul.f32 %v1358, %v1464
        %v1466 = vsub.f32 1.0, %v1465
        %v1467 = vmul.f32 %v1464, %v1466
        %v1468 = vadd.f32 %v1464, %v1467
        %vm1469 = vweird.f32 %v1358
        %vm1470 = vweird.f32 %v1464
        %vm1471 = vmor %vm1469, %vm1470
        %v1472 = vsel %vm1471, %v1464, %v1468
        %v1473 = vand.u32 2147483647, %v1358
        %vm1474 = vcmp.eq.f32.partialorder %v1473, 8.507059e+37
        %v1475 = vand.u32 %v1358, 2147483648
        %v1476 = vor.u32 1.1754944e-38, %v1475
        %v1477 = vsel %vm1474, %v1476, %v1472
        %v1478 = vmul.f32 1.0, %v1477
        %v1479 = vrcp.pop %v1359
        %v1480 = vmul.f32 %v1359, %v1479
        %v1481 = vsub.f32 1.0, %v1480
        %v1482 = vmul.f32 %v1479, %v1481
        %v1483 = vadd.f32 %v1479, %v1482
        %vm1484 = vweird.f32 %v1359
        %vm1485 = vweird.f32 %v1479
        %vm1486 = vmor %vm1484, %vm1485
        %v1487 = vsel %vm1486, %v1479, %v1483
        %v1488 = vand.u32 2147483647, %v1359
        %vm1489 = vcmp.eq.f32.partialorder %v1488, 8.507059e+37
        %v1490 = vand.u32 %v1359, 2147483648
        %v1491 = vor.u32 1.1754944e-38, %v1490
        %v1492 = vsel %vm1489, %v1491, %v1487
        %v1493 = vmul.f32 1.0, %v1492
        %v1494 = vrcp.pop %v1360
        %v1495 = vmul.f32 %v1360, %v1494
        %v1496 = vsub.f32 1.0, %v1495
        %v1497 = vmul.f32 %v1494, %v1496
        %v1498 = vadd.f32 %v1494, %v1497
        %vm1499 = vweird.f32 %v1360
        %vm1500 = vweird.f32 %v1494
        %vm1501 = vmor %vm1499, %vm1500
        %v1502 = vsel %vm1501, %v1494, %v1498
        %v1503 = vand.u32 2147483647, %v1360
        %vm1504 = vcmp.eq.f32.partialorder %v1503, 8.507059e+37
        %v1505 = vand.u32 %v1360, 2147483648
        %v1506 = vor.u32 1.1754944e-38, %v1505
        %v1507 = vsel %vm1504, %v1506, %v1502
        %v1508 = vmul.f32 1.0, %v1507
        %v1509 = vrcp.pop %v1361
        %v1510 = vmul.f32 %v1361, %v1509
        %v1511 = vsub.f32 1.0, %v1510
        %v1512 = vmul.f32 %v1509, %v1511
        %v1513 = vadd.f32 %v1509, %v1512
        %vm1514 = vweird.f32 %v1361
        %vm1515 = vweird.f32 %v1509
        %vm1516 = vmor %vm1514, %vm1515
        %v1517 = vsel %vm1516, %v1509, %v1513
        %v1518 = vand.u32 2147483647, %v1361
        %vm1519 = vcmp.eq.f32.partialorder %v1518, 8.507059e+37
        %v1520 = vand.u32 %v1361, 2147483648
        %v1521 = vor.u32 1.1754944e-38, %v1520
        %v1522 = vsel %vm1519, %v1521, %v1517
        %v1523 = vmul.f32 1.0, %v1522
        %v1524 = vrcp.pop %v1362
        %v1525 = vmul.f32 %v1362, %v1524
        %v1526 = vsub.f32 1.0, %v1525
        %v1527 = vmul.f32 %v1524, %v1526
        %v1528 = vadd.f32 %v1524, %v1527
        %vm1529 = vweird.f32 %v1362
        %vm1530 = vweird.f32 %v1524
        %vm1531 = vmor %vm1529, %vm1530
        %v1532 = vsel %vm1531, %v1524, %v1528
        %v1533 = vand.u32 2147483647, %v1362
        %vm1534 = vcmp.eq.f32.partialorder %v1533, 8.507059e+37
        %v1535 = vand.u32 %v1362, 2147483648
        %v1536 = vor.u32 1.1754944e-38, %v1535
        %v1537 = vsel %vm1534, %v1536, %v1532
        %v1538 = vmul.f32 1.0, %v1537
        %v1539 = vrcp.pop %v1363
        %v1540 = vmul.f32 %v1363, %v1539
        %v1541 = vsub.f32 1.0, %v1540
        %v1542 = vmul.f32 %v1539, %v1541
        %v1543 = vadd.f32 %v1539, %v1542
        %vm1544 = vweird.f32 %v1363
        %vm1545 = vweird.f32 %v1539
        %vm1546 = vmor %vm1544, %vm1545
        %v1547 = vsel %vm1546, %v1539, %v1543
        %v1548 = vand.u32 2147483647, %v1363
        %vm1549 = vcmp.eq.f32.partialorder %v1548, 8.507059e+37
        %v1550 = vand.u32 %v1363, 2147483648
        %v1551 = vor.u32 1.1754944e-38, %v1550
        %v1552 = vsel %vm1549, %v1551, %v1547
        %v1553 = vmul.f32 1.0, %v1552
        %v1554 = vrcp.pop %v1364
        %v1555 = vmul.f32 %v1364, %v1554
        %v1556 = vsub.f32 1.0, %v1555
        %v1557 = vmul.f32 %v1554, %v1556
        %v1558 = vadd.f32 %v1554, %v1557
        %vm1559 = vweird.f32 %v1364
        %vm1560 = vweird.f32 %v1554
        %vm1561 = vmor %vm1559, %vm1560
        %v1562 = vsel %vm1561, %v1554, %v1558
        %v1563 = vand.u32 2147483647, %v1364
        %vm1564 = vcmp.eq.f32.partialorder %v1563, 8.507059e+37
        %v1565 = vand.u32 %v1364, 2147483648
        %v1566 = vor.u32 1.1754944e-38, %v1565
        %v1567 = vsel %vm1564, %v1566, %v1562
        %v1568 = vmul.f32 1.0, %v1567
        %v1569 = vrcp.pop %v1365
        %v1570 = vmul.f32 %v1365, %v1569
        %v1571 = vsub.f32 1.0, %v1570
        %v1572 = vmul.f32 %v1569, %v1571
        %v1573 = vadd.f32 %v1569, %v1572
        %vm1574 = vweird.f32 %v1365
        %vm1575 = vweird.f32 %v1569
        %vm1576 = vmor %vm1574, %vm1575
        %v1577 = vsel %vm1576, %v1569, %v1573
        %v1578 = vand.u32 2147483647, %v1365
        %vm1579 = vcmp.eq.f32.partialorder %v1578, 8.507059e+37
        %v1580 = vand.u32 %v1365, 2147483648
        %v1581 = vor.u32 1.1754944e-38, %v1580
        %v1582 = vsel %vm1579, %v1581, %v1577
        %v1583 = vmul.f32 1.0, %v1582
        %v1584 = vrcp.pop %v1366
        %v1585 = vmul.f32 %v1366, %v1584
        %v1586 = vsub.f32 1.0, %v1585
        %v1587 = vmul.f32 %v1584, %v1586
        %v1588 = vadd.f32 %v1584, %v1587
        %vm1589 = vweird.f32 %v1366
        %vm1590 = vweird.f32 %v1584
        %vm1591 = vmor %vm1589, %vm1590
        %v1592 = vsel %vm1591, %v1584, %v1588
        %v1593 = vand.u32 2147483647, %v1366
        %vm1594 = vcmp.eq.f32.partialorder %v1593, 8.507059e+37
        %v1595 = vand.u32 %v1366, 2147483648
        %v1596 = vor.u32 1.1754944e-38, %v1595
        %v1597 = vsel %vm1594, %v1596, %v1592
        %v1598 = vmul.f32 1.0, %v1597
        %v1599 = vrcp.pop %v1367
        %v1600 = vmul.f32 %v1367, %v1599
        %v1601 = vsub.f32 1.0, %v1600
        %v1602 = vmul.f32 %v1599, %v1601
        %v1603 = vadd.f32 %v1599, %v1602
        %vm1604 = vweird.f32 %v1367
        %vm1605 = vweird.f32 %v1599
        %vm1606 = vmor %vm1604, %vm1605
        %v1607 = vsel %vm1606, %v1599, %v1603
        %v1608 = vand.u32 2147483647, %v1367
        %vm1609 = vcmp.eq.f32.partialorder %v1608, 8.507059e+37
        %v1610 = vand.u32 %v1367, 2147483648
        %v1611 = vor.u32 1.1754944e-38, %v1610
        %v1612 = vsel %vm1609, %v1611, %v1607
        %v1613 = vmul.f32 1.0, %v1612
        %v1614 = vrcp.pop %v1368
        %v1615 = vmul.f32 %v1368, %v1614
        %v1616 = vsub.f32 1.0, %v1615
        %v1617 = vmul.f32 %v1614, %v1616
        %v1618 = vadd.f32 %v1614, %v1617
        %vm1619 = vweird.f32 %v1368
        %vm1620 = vweird.f32 %v1614
        %vm1621 = vmor %vm1619, %vm1620
        %v1622 = vsel %vm1621, %v1614, %v1618
        %v1623 = vand.u32 2147483647, %v1368
        %vm1624 = vcmp.eq.f32.partialorder %v1623, 8.507059e+37
        %v1625 = vand.u32 %v1368, 2147483648
        %v1626 = vor.u32 1.1754944e-38, %v1625
        %v1627 = vsel %vm1624, %v1626, %v1622
        %v1628 = vmul.f32 1.0, %v1627
        %v1629 = vrcp.pop %v1369
        %v1630 = vmul.f32 %v1369, %v1629
        %v1631 = vsub.f32 1.0, %v1630
        %v1632 = vmul.f32 %v1629, %v1631
        %v1633 = vadd.f32 %v1629, %v1632
        %vm1634 = vweird.f32 %v1369
        %vm1635 = vweird.f32 %v1629
        %vm1636 = vmor %vm1634, %vm1635
        %v1637 = vsel %vm1636, %v1629, %v1633
        %v1638 = vand.u32 2147483647, %v1369
        %vm1639 = vcmp.eq.f32.partialorder %v1638, 8.507059e+37
        %v1640 = vand.u32 %v1369, 2147483648
        %v1641 = vor.u32 1.1754944e-38, %v1640
        %v1642 = vsel %vm1639, %v1641, %v1637
        %v1643 = vmul.f32 1.0, %v1642
        %v1644 = vrcp.pop %v1370
        %v1645 = vmul.f32 %v1370, %v1644
        %v1646 = vsub.f32 1.0, %v1645
        %v1647 = vmul.f32 %v1644, %v1646
        %v1648 = vadd.f32 %v1644, %v1647
        %vm1649 = vweird.f32 %v1370
        %vm1650 = vweird.f32 %v1644
        %vm1651 = vmor %vm1649, %vm1650
        %v1652 = vsel %vm1651, %v1644, %v1648
        %v1653 = vand.u32 2147483647, %v1370
        %vm1654 = vcmp.eq.f32.partialorder %v1653, 8.507059e+37
        %v1655 = vand.u32 %v1370, 2147483648
        %v1656 = vor.u32 1.1754944e-38, %v1655
        %v1657 = vsel %vm1654, %v1656, %v1652
        %v1658 = vmul.f32 1.0, %v1657
        %v1659 = vrcp.pop %v1371
        %v1660 = vmul.f32 %v1371, %v1659
        %v1661 = vsub.f32 1.0, %v1660
        %v1662 = vmul.f32 %v1659, %v1661
        %v1663 = vadd.f32 %v1659, %v1662
        %vm1664 = vweird.f32 %v1371
        %vm1665 = vweird.f32 %v1659
        %vm1666 = vmor %vm1664, %vm1665
        %v1667 = vsel %vm1666, %v1659, %v1663
        %v1668 = vand.u32 2147483647, %v1371
        %vm1669 = vcmp.eq.f32.partialorder %v1668, 8.507059e+37
        %v1670 = vand.u32 %v1371, 2147483648
        %v1671 = vor.u32 1.1754944e-38, %v1670
        %v1672 = vsel %vm1669, %v1671, %v1667
        %v1673 = vmul.f32 1.0, %v1672
        %v1674 = vrcp.pop %v1372
        %v1675 = vmul.f32 %v1372, %v1674
        %v1676 = vsub.f32 1.0, %v1675
        %v1677 = vmul.f32 %v1674, %v1676
        %v1678 = vadd.f32 %v1674, %v1677
        %vm1679 = vweird.f32 %v1372
        %vm1680 = vweird.f32 %v1674
        %vm1681 = vmor %vm1679, %vm1680
        %v1682 = vsel %vm1681, %v1674, %v1678
        %v1683 = vand.u32 2147483647, %v1372
        %vm1684 = vcmp.eq.f32.partialorder %v1683, 8.507059e+37
        %v1685 = vand.u32 %v1372, 2147483648
        %v1686 = vor.u32 1.1754944e-38, %v1685
        %v1687 = vsel %vm1684, %v1686, %v1682
        %v1688 = vmul.f32 1.0, %v1687
        %v1689 = vrcp.pop %v1373
        %v1690 = vmul.f32 %v1373, %v1689
        %v1691 = vsub.f32 1.0, %v1690
        %v1692 = vmul.f32 %v1689, %v1691
        %v1693 = vadd.f32 %v1689, %v1692
        %vm1694 = vweird.f32 %v1373
        %vm1695 = vweird.f32 %v1689
        %vm1696 = vmor %vm1694, %vm1695
        %v1697 = vsel %vm1696, %v1689, %v1693
        %v1698 = vand.u32 2147483647, %v1373
        %vm1699 = vcmp.eq.f32.partialorder %v1698, 8.507059e+37
        %v1700 = vand.u32 %v1373, 2147483648
        %v1701 = vor.u32 1.1754944e-38, %v1700
        %v1702 = vsel %vm1699, %v1701, %v1697
        %v1703 = vmul.f32 1.0, %v1702
        %v1704 = vrcp.pop %v1374
        %v1705 = vmul.f32 %v1374, %v1704
        %v1706 = vsub.f32 1.0, %v1705
        %v1707 = vmul.f32 %v1704, %v1706
        %v1708 = vadd.f32 %v1704, %v1707
        %vm1709 = vweird.f32 %v1374
        %vm1710 = vweird.f32 %v1704
        %vm1711 = vmor %vm1709, %vm1710
        %v1712 = vsel %vm1711, %v1704, %v1708
        %v1713 = vand.u32 2147483647, %v1374
        %vm1714 = vcmp.eq.f32.partialorder %v1713, 8.507059e+37
        %v1715 = vand.u32 %v1374, 2147483648
        %v1716 = vor.u32 1.1754944e-38, %v1715
        %v1717 = vsel %vm1714, %v1716, %v1712
        %v1718 = vmul.f32 1.0, %v1717
        %v1719 = vrcp.pop %v1375
        %v1720 = vmul.f32 %v1375, %v1719
        %v1721 = vsub.f32 1.0, %v1720
        %v1722 = vmul.f32 %v1719, %v1721
        %v1723 = vadd.f32 %v1719, %v1722
        %vm1724 = vweird.f32 %v1375
        %vm1725 = vweird.f32 %v1719
        %vm1726 = vmor %vm1724, %vm1725
        %v1727 = vsel %vm1726, %v1719, %v1723
        %v1728 = vand.u32 2147483647, %v1375
        %vm1729 = vcmp.eq.f32.partialorder %v1728, 8.507059e+37
        %v1730 = vand.u32 %v1375, 2147483648
        %v1731 = vor.u32 1.1754944e-38, %v1730
        %v1732 = vsel %vm1729, %v1731, %v1727
        %v1733 = vmul.f32 1.0, %v1732
        %v1734 = vrcp.pop %v1376
        %v1735 = vmul.f32 %v1376, %v1734
        %v1736 = vsub.f32 1.0, %v1735
        %v1737 = vmul.f32 %v1734, %v1736
        %v1738 = vadd.f32 %v1734, %v1737
        %vm1739 = vweird.f32 %v1376
        %vm1740 = vweird.f32 %v1734
        %vm1741 = vmor %vm1739, %vm1740
        %v1742 = vsel %vm1741, %v1734, %v1738
        %v1743 = vand.u32 2147483647, %v1376
        %vm1744 = vcmp.eq.f32.partialorder %v1743, 8.507059e+37
        %v1745 = vand.u32 %v1376, 2147483648
        %v1746 = vor.u32 1.1754944e-38, %v1745
        %v1747 = vsel %vm1744, %v1746, %v1742
        %v1748 = vmul.f32 1.0, %v1747
        %v1749 = vrcp.pop %v1377
        %v1750 = vmul.f32 %v1377, %v1749
        %v1751 = vsub.f32 1.0, %v1750
        %v1752 = vmul.f32 %v1749, %v1751
        %v1753 = vadd.f32 %v1749, %v1752
        %vm1754 = vweird.f32 %v1377
        %vm1755 = vweird.f32 %v1749
        %vm1756 = vmor %vm1754, %vm1755
        %v1757 = vsel %vm1756, %v1749, %v1753
        %v1758 = vand.u32 2147483647, %v1377
        %vm1759 = vcmp.eq.f32.partialorder %v1758, 8.507059e+37
        %v1760 = vand.u32 %v1377, 2147483648
        %v1761 = vor.u32 1.1754944e-38, %v1760
        %v1762 = vsel %vm1759, %v1761, %v1757
        %v1763 = vmul.f32 1.0, %v1762
        %v1764 = vrcp.pop %v1378
        %v1765 = vmul.f32 %v1378, %v1764
        %v1766 = vsub.f32 1.0, %v1765
        %v1767 = vmul.f32 %v1764, %v1766
        %v1768 = vadd.f32 %v1764, %v1767
        %vm1769 = vweird.f32 %v1378
        %vm1770 = vweird.f32 %v1764
        %vm1771 = vmor %vm1769, %vm1770
        %v1772 = vsel %vm1771, %v1764, %v1768
        %v1773 = vand.u32 2147483647, %v1378
        %vm1774 = vcmp.eq.f32.partialorder %v1773, 8.507059e+37
        %v1775 = vand.u32 %v1378, 2147483648
        %v1776 = vor.u32 1.1754944e-38, %v1775
        %v1777 = vsel %vm1774, %v1776, %v1772
        %v1778 = vmul.f32 1.0, %v1777
        %v1779 = vrcp.pop %v1379
        %v1780 = vmul.f32 %v1379, %v1779
        %v1781 = vsub.f32 1.0, %v1780
        %v1782 = vmul.f32 %v1779, %v1781
        %v1783 = vadd.f32 %v1779, %v1782
        %vm1784 = vweird.f32 %v1379
        %vm1785 = vweird.f32 %v1779
        %vm1786 = vmor %vm1784, %vm1785
        %v1787 = vsel %vm1786, %v1779, %v1783
        %v1788 = vand.u32 2147483647, %v1379
        %vm1789 = vcmp.eq.f32.partialorder %v1788, 8.507059e+37
        %v1790 = vand.u32 %v1379, 2147483648
        %v1791 = vor.u32 1.1754944e-38, %v1790
        %v1792 = vsel %vm1789, %v1791, %v1787
        %v1793 = vmul.f32 1.0, %v1792
        %v1794 = vrcp.pop %v1380
        %v1795 = vmul.f32 %v1380, %v1794
        %v1796 = vsub.f32 1.0, %v1795
        %v1797 = vmul.f32 %v1794, %v1796
        %v1798 = vadd.f32 %v1794, %v1797
        %vm1799 = vweird.f32 %v1380
        %vm1800 = vweird.f32 %v1794
        %vm1801 = vmor %vm1799, %vm1800
        %v1802 = vsel %vm1801, %v1794, %v1798
        %v1803 = vand.u32 2147483647, %v1380
        %vm1804 = vcmp.eq.f32.partialorder %v1803, 8.507059e+37
        %v1805 = vand.u32 %v1380, 2147483648
        %v1806 = vor.u32 1.1754944e-38, %v1805
        %v1807 = vsel %vm1804, %v1806, %v1802
        %v1808 = vmul.f32 1.0, %v1807
        %v1809 = vrcp.pop %v1381
        %v1810 = vmul.f32 %v1381, %v1809
        %v1811 = vsub.f32 1.0, %v1810
        %v1812 = vmul.f32 %v1809, %v1811
        %v1813 = vadd.f32 %v1809, %v1812
        %vm1814 = vweird.f32 %v1381
        %vm1815 = vweird.f32 %v1809
        %vm1816 = vmor %vm1814, %vm1815
        %v1817 = vsel %vm1816, %v1809, %v1813
        %v1818 = vand.u32 2147483647, %v1381
        %vm1819 = vcmp.eq.f32.partialorder %v1818, 8.507059e+37
        %v1820 = vand.u32 %v1381, 2147483648
        %v1821 = vor.u32 1.1754944e-38, %v1820
        %v1822 = vsel %vm1819, %v1821, %v1817
        %v1823 = vmul.f32 1.0, %v1822
        %v1824 = vrcp.pop %v1382
        %v1825 = vmul.f32 %v1382, %v1824
        %v1826 = vsub.f32 1.0, %v1825
        %v1827 = vmul.f32 %v1824, %v1826
        %v1828 = vadd.f32 %v1824, %v1827
        %vm1829 = vweird.f32 %v1382
        %vm1830 = vweird.f32 %v1824
        %vm1831 = vmor %vm1829, %vm1830
        %v1832 = vsel %vm1831, %v1824, %v1828
        %v1833 = vand.u32 2147483647, %v1382
        %vm1834 = vcmp.eq.f32.partialorder %v1833, 8.507059e+37
        %v1835 = vand.u32 %v1382, 2147483648
        %v1836 = vor.u32 1.1754944e-38, %v1835
        %v1837 = vsel %vm1834, %v1836, %v1832
        %v1838 = vmul.f32 1.0, %v1837
        %v1839 = vrcp.pop %v1383
        %v1840 = vmul.f32 %v1383, %v1839
        %v1841 = vsub.f32 1.0, %v1840
        %v1842 = vmul.f32 %v1839, %v1841
        %v1843 = vadd.f32 %v1839, %v1842
        %vm1844 = vweird.f32 %v1383
        %vm1845 = vweird.f32 %v1839
        %vm1846 = vmor %vm1844, %vm1845
        %v1847 = vsel %vm1846, %v1839, %v1843
        %v1848 = vand.u32 2147483647, %v1383
        %vm1849 = vcmp.eq.f32.partialorder %v1848, 8.507059e+37
        %v1850 = vand.u32 %v1383, 2147483648
        %v1851 = vor.u32 1.1754944e-38, %v1850
        %v1852 = vsel %vm1849, %v1851, %v1847
        %v1853 = vmul.f32 1.0, %v1852
        %v1854 = vrcp.pop %v1384
        %v1855 = vmul.f32 %v1384, %v1854
        %v1856 = vsub.f32 1.0, %v1855
        %v1857 = vmul.f32 %v1854, %v1856
        %v1858 = vadd.f32 %v1854, %v1857
        %vm1859 = vweird.f32 %v1384
        %vm1860 = vweird.f32 %v1854
        %vm1861 = vmor %vm1859, %vm1860
        %v1862 = vsel %vm1861, %v1854, %v1858
        %v1863 = vand.u32 2147483647, %v1384
        %vm1864 = vcmp.eq.f32.partialorder %v1863, 8.507059e+37
        %v1865 = vand.u32 %v1384, 2147483648
        %v1866 = vor.u32 1.1754944e-38, %v1865
        %v1867 = vsel %vm1864, %v1866, %v1862
        %v1868 = vmul.f32 1.0, %v1867
        %v1869 = vrcp.pop %v1385
        %v1870 = vmul.f32 %v1385, %v1869
        %v1871 = vsub.f32 1.0, %v1870
        %v1872 = vmul.f32 %v1869, %v1871
        %v1873 = vadd.f32 %v1869, %v1872
        %vm1874 = vweird.f32 %v1385
        %vm1875 = vweird.f32 %v1869
        %vm1876 = vmor %vm1874, %vm1875
        %v1877 = vsel %vm1876, %v1869, %v1873
        %v1878 = vand.u32 2147483647, %v1385
        %vm1879 = vcmp.eq.f32.partialorder %v1878, 8.507059e+37
        %v1880 = vand.u32 %v1385, 2147483648
        %v1881 = vor.u32 1.1754944e-38, %v1880
        %v1882 = vsel %vm1879, %v1881, %v1877
        %v1883 = vmul.f32 1.0, %v1882
        %v1884 = vrcp.pop %v1386
        %v1885 = vmul.f32 %v1386, %v1884
        %v1886 = vsub.f32 1.0, %v1885
        %v1887 = vmul.f32 %v1884, %v1886
        %v1888 = vadd.f32 %v1884, %v1887
        %vm1889 = vweird.f32 %v1386
        %vm1890 = vweird.f32 %v1884
        %vm1891 = vmor %vm1889, %vm1890
        %v1892 = vsel %vm1891, %v1884, %v1888
        %v1893 = vand.u32 2147483647, %v1386
        %vm1894 = vcmp.eq.f32.partialorder %v1893, 8.507059e+37
        %v1895 = vand.u32 %v1386, 2147483648
        %v1896 = vor.u32 1.1754944e-38, %v1895
        %v1897 = vsel %vm1894, %v1896, %v1892
        %v1898 = vmul.f32 1.0, %v1897
        %v1899 = vrcp.pop %v1387
        %v1900 = vmul.f32 %v1387, %v1899
        %v1901 = vsub.f32 1.0, %v1900
        %v1902 = vmul.f32 %v1899, %v1901
        %v1903 = vadd.f32 %v1899, %v1902
        %vm1904 = vweird.f32 %v1387
        %vm1905 = vweird.f32 %v1899
        %vm1906 = vmor %vm1904, %vm1905
        %v1907 = vsel %vm1906, %v1899, %v1903
        %v1908 = vand.u32 2147483647, %v1387
        %vm1909 = vcmp.eq.f32.partialorder %v1908, 8.507059e+37
        %v1910 = vand.u32 %v1387, 2147483648
        %v1911 = vor.u32 1.1754944e-38, %v1910
        %v1912 = vsel %vm1909, %v1911, %v1907
        %v1913 = vmul.f32 1.0, %v1912
        %v1914 = vrcp.pop %v1388
        %v1915 = vmul.f32 %v1388, %v1914
        %v1916 = vsub.f32 1.0, %v1915
        %v1917 = vmul.f32 %v1914, %v1916
        %v1918 = vadd.f32 %v1914, %v1917
        %vm1919 = vweird.f32 %v1388
        %vm1920 = vweird.f32 %v1914
        %vm1921 = vmor %vm1919, %vm1920
        %v1922 = vsel %vm1921, %v1914, %v1918
        %v1923 = vand.u32 2147483647, %v1388
        %vm1924 = vcmp.eq.f32.partialorder %v1923, 8.507059e+37
        %v1925 = vand.u32 %v1388, 2147483648
        %v1926 = vor.u32 1.1754944e-38, %v1925
        %v1927 = vsel %vm1924, %v1926, %v1922
        %v1928 = vmul.f32 1.0, %v1927
        %v1929 = vrcp.pop %v1389
        %v1930 = vmul.f32 %v1389, %v1929
        %v1931 = vsub.f32 1.0, %v1930
        %v1932 = vmul.f32 %v1929, %v1931
        %v1933 = vadd.f32 %v1929, %v1932
        %vm1934 = vweird.f32 %v1389
        %vm1935 = vweird.f32 %v1929
        %vm1936 = vmor %vm1934, %vm1935
        %v1937 = vsel %vm1936, %v1929, %v1933
        %v1938 = vand.u32 2147483647, %v1389
        %vm1939 = vcmp.eq.f32.partialorder %v1938, 8.507059e+37
        %v1940 = vand.u32 %v1389, 2147483648
        %v1941 = vor.u32 1.1754944e-38, %v1940
        %v1942 = vsel %vm1939, %v1941, %v1937
        %v1943 = vmul.f32 1.0, %v1942
        %v1944 = vrcp.pop %v1390
        %v1945 = vmul.f32 %v1390, %v1944
        %v1946 = vsub.f32 1.0, %v1945
        %v1947 = vmul.f32 %v1944, %v1946
        %v1948 = vadd.f32 %v1944, %v1947
        %vm1949 = vweird.f32 %v1390
        %vm1950 = vweird.f32 %v1944
        %vm1951 = vmor %vm1949, %vm1950
        %v1952 = vsel %vm1951, %v1944, %v1948
        %v1953 = vand.u32 2147483647, %v1390
        %vm1954 = vcmp.eq.f32.partialorder %v1953, 8.507059e+37
        %v1955 = vand.u32 %v1390, 2147483648
        %v1956 = vor.u32 1.1754944e-38, %v1955
        %v1957 = vsel %vm1954, %v1956, %v1952
        %v1958 = vmul.f32 1.0, %v1957
        %v1959 = vrcp.pop %v1391
        %v1960 = vmul.f32 %v1391, %v1959
        %v1961 = vsub.f32 1.0, %v1960
        %v1962 = vmul.f32 %v1959, %v1961
        %v1963 = vadd.f32 %v1959, %v1962
        %vm1964 = vweird.f32 %v1391
        %vm1965 = vweird.f32 %v1959
        %vm1966 = vmor %vm1964, %vm1965
        %v1967 = vsel %vm1966, %v1959, %v1963
        %v1968 = vand.u32 2147483647, %v1391
        %vm1969 = vcmp.eq.f32.partialorder %v1968, 8.507059e+37
        %v1970 = vand.u32 %v1391, 2147483648
        %v1971 = vor.u32 1.1754944e-38, %v1970
        %v1972 = vsel %vm1969, %v1971, %v1967
        %v1973 = vmul.f32 1.0, %v1972
        %v1974 = vrcp.pop %v1392
        %v1975 = vmul.f32 %v1392, %v1974
        %v1976 = vsub.f32 1.0, %v1975
        %v1977 = vmul.f32 %v1974, %v1976
        %v1978 = vadd.f32 %v1974, %v1977
        %vm1979 = vweird.f32 %v1392
        %vm1980 = vweird.f32 %v1974
        %vm1981 = vmor %vm1979, %vm1980
        %v1982 = vsel %vm1981, %v1974, %v1978
        %v1983 = vand.u32 2147483647, %v1392
        %vm1984 = vcmp.eq.f32.partialorder %v1983, 8.507059e+37
        %v1985 = vand.u32 %v1392, 2147483648
        %v1986 = vor.u32 1.1754944e-38, %v1985
        %v1987 = vsel %vm1984, %v1986, %v1982
        %v1988 = vmul.f32 1.0, %v1987
        %v1989 = vrcp.pop %v1393
        %v1990 = vmul.f32 %v1393, %v1989
        %v1991 = vsub.f32 1.0, %v1990
        %v1992 = vmul.f32 %v1989, %v1991
        %v1993 = vadd.f32 %v1989, %v1992
        %vm1994 = vweird.f32 %v1393
        %vm1995 = vweird.f32 %v1989
        %vm1996 = vmor %vm1994, %vm1995
        %v1997 = vsel %vm1996, %v1989, %v1993
        %v1998 = vand.u32 2147483647, %v1393
        %vm1999 = vcmp.eq.f32.partialorder %v1998, 8.507059e+37
        %v2000 = vand.u32 %v1393, 2147483648
        %v2001 = vor.u32 1.1754944e-38, %v2000
        %v2002 = vsel %vm1999, %v2001, %v1997
        %v2003 = vmul.f32 1.0, %v2002
        %v2004 = vrcp.pop %v1394
        %v2005 = vmul.f32 %v1394, %v2004
        %v2006 = vsub.f32 1.0, %v2005
        %v2007 = vmul.f32 %v2004, %v2006
        %v2008 = vadd.f32 %v2004, %v2007
        %vm2009 = vweird.f32 %v1394
        %vm2010 = vweird.f32 %v2004
        %vm2011 = vmor %vm2009, %vm2010
        %v2012 = vsel %vm2011, %v2004, %v2008
        %v2013 = vand.u32 2147483647, %v1394
        %vm2014 = vcmp.eq.f32.partialorder %v2013, 8.507059e+37
        %v2015 = vand.u32 %v1394, 2147483648
        %v2016 = vor.u32 1.1754944e-38, %v2015
        %v2017 = vsel %vm2014, %v2016, %v2012
        %v2018 = vmul.f32 1.0, %v2017
        %v2019 = vrcp.pop %v1395
        %v2020 = vmul.f32 %v1395, %v2019
        %v2021 = vsub.f32 1.0, %v2020
        %v2022 = vmul.f32 %v2019, %v2021
        %v2023 = vadd.f32 %v2019, %v2022
        %vm2024 = vweird.f32 %v1395
        %vm2025 = vweird.f32 %v2019
        %vm2026 = vmor %vm2024, %vm2025
        %v2027 = vsel %vm2026, %v2019, %v2023
        %v2028 = vand.u32 2147483647, %v1395
        %vm2029 = vcmp.eq.f32.partialorder %v2028, 8.507059e+37
        %v2030 = vand.u32 %v1395, 2147483648
        %v2031 = vor.u32 1.1754944e-38, %v2030
        %v2032 = vsel %vm2029, %v2031, %v2027
        %v2033 = vmul.f32 1.0, %v2032
        %v2034 = vrcp.pop %v1396
        %v2035 = vmul.f32 %v1396, %v2034
        %v2036 = vsub.f32 1.0, %v2035
        %v2037 = vmul.f32 %v2034, %v2036
        %v2038 = vadd.f32 %v2034, %v2037
        %vm2039 = vweird.f32 %v1396
        %vm2040 = vweird.f32 %v2034
        %vm2041 = vmor %vm2039, %vm2040
        %v2042 = vsel %vm2041, %v2034, %v2038
        %v2043 = vand.u32 2147483647, %v1396
        %vm2044 = vcmp.eq.f32.partialorder %v2043, 8.507059e+37
        %v2045 = vand.u32 %v1396, 2147483648
        %v2046 = vor.u32 1.1754944e-38, %v2045
        %v2047 = vsel %vm2044, %v2046, %v2042
        %v2048 = vmul.f32 1.0, %v2047
        %v2049 = vrcp.pop %v1397
        %v2050 = vmul.f32 %v1397, %v2049
        %v2051 = vsub.f32 1.0, %v2050
        %v2052 = vmul.f32 %v2049, %v2051
        %v2053 = vadd.f32 %v2049, %v2052
        %vm2054 = vweird.f32 %v1397
        %vm2055 = vweird.f32 %v2049
        %vm2056 = vmor %vm2054, %vm2055
        %v2057 = vsel %vm2056, %v2049, %v2053
        %v2058 = vand.u32 2147483647, %v1397
        %vm2059 = vcmp.eq.f32.partialorder %v2058, 8.507059e+37
        %v2060 = vand.u32 %v1397, 2147483648
        %v2061 = vor.u32 1.1754944e-38, %v2060
        %v2062 = vsel %vm2059, %v2061, %v2057
        %v2063 = vmul.f32 1.0, %v2062
        %v2064 = vrcp.pop %v1398
        %v2065 = vmul.f32 %v1398, %v2064
        %v2066 = vsub.f32 1.0, %v2065
        %v2067 = vmul.f32 %v2064, %v2066
        %v2068 = vadd.f32 %v2064, %v2067
        %vm2069 = vweird.f32 %v1398
        %vm2070 = vweird.f32 %v2064
        %vm2071 = vmor %vm2069, %vm2070
        %v2072 = vsel %vm2071, %v2064, %v2068
        %v2073 = vand.u32 2147483647, %v1398
        %vm2074 = vcmp.eq.f32.partialorder %v2073, 8.507059e+37
        %v2075 = vand.u32 %v1398, 2147483648
        %v2076 = vor.u32 1.1754944e-38, %v2075
        %v2077 = vsel %vm2074, %v2076, %v2072
        %v2078 = vmul.f32 1.0, %v2077
        %v2079 = vrcp.pop %v1399
        %v2080 = vmul.f32 %v1399, %v2079
        %v2081 = vsub.f32 1.0, %v2080
        %v2082 = vmul.f32 %v2079, %v2081
        %v2083 = vadd.f32 %v2079, %v2082
        %vm2084 = vweird.f32 %v1399
        %vm2085 = vweird.f32 %v2079
        %vm2086 = vmor %vm2084, %vm2085
        %v2087 = vsel %vm2086, %v2079, %v2083
        %v2088 = vand.u32 2147483647, %v1399
        %vm2089 = vcmp.eq.f32.partialorder %v2088, 8.507059e+37
        %v2090 = vand.u32 %v1399, 2147483648
        %v2091 = vor.u32 1.1754944e-38, %v2090
        %v2092 = vsel %vm2089, %v2091, %v2087
        %v2093 = vmul.f32 1.0, %v2092
        %v2094 = vrcp.pop %v1400
        %v2095 = vmul.f32 %v1400, %v2094
        %v2096 = vsub.f32 1.0, %v2095
        %v2097 = vmul.f32 %v2094, %v2096
        %v2098 = vadd.f32 %v2094, %v2097
        %vm2099 = vweird.f32 %v1400
        %vm2100 = vweird.f32 %v2094
        %vm2101 = vmor %vm2099, %vm2100
        %v2102 = vsel %vm2101, %v2094, %v2098
        %v2103 = vand.u32 2147483647, %v1400
        %vm2104 = vcmp.eq.f32.partialorder %v2103, 8.507059e+37
        %v2105 = vand.u32 %v1400, 2147483648
        %v2106 = vor.u32 1.1754944e-38, %v2105
        %v2107 = vsel %vm2104, %v2106, %v2102
        %v2108 = vmul.f32 1.0, %v2107
        %v2109 = vrcp.pop %v1401
        %v2110 = vmul.f32 %v1401, %v2109
        %v2111 = vsub.f32 1.0, %v2110
        %v2112 = vmul.f32 %v2109, %v2111
        %v2113 = vadd.f32 %v2109, %v2112
        %vm2114 = vweird.f32 %v1401
        %vm2115 = vweird.f32 %v2109
        %vm2116 = vmor %vm2114, %vm2115
        %v2117 = vsel %vm2116, %v2109, %v2113
        %v2118 = vand.u32 2147483647, %v1401
        %vm2119 = vcmp.eq.f32.partialorder %v2118, 8.507059e+37
        %v2120 = vand.u32 %v1401, 2147483648
        %v2121 = vor.u32 1.1754944e-38, %v2120
        %v2122 = vsel %vm2119, %v2121, %v2117
        %v2123 = vmul.f32 1.0, %v2122
        %v2124 = vrcp.pop %v1402
        %v2125 = vmul.f32 %v1402, %v2124
        %v2126 = vsub.f32 1.0, %v2125
        %v2127 = vmul.f32 %v2124, %v2126
        %v2128 = vadd.f32 %v2124, %v2127
        %vm2129 = vweird.f32 %v1402
        %vm2130 = vweird.f32 %v2124
        %vm2131 = vmor %vm2129, %vm2130
        %v2132 = vsel %vm2131, %v2124, %v2128
        %v2133 = vand.u32 2147483647, %v1402
        %vm2134 = vcmp.eq.f32.partialorder %v2133, 8.507059e+37
        %v2135 = vand.u32 %v1402, 2147483648
        %v2136 = vor.u32 1.1754944e-38, %v2135
        %v2137 = vsel %vm2134, %v2136, %v2132
        %v2138 = vmul.f32 1.0, %v2137
        %v2139 = vrcp.pop %v1403
        %v2140 = vmul.f32 %v1403, %v2139
        %v2141 = vsub.f32 1.0, %v2140
        %v2142 = vmul.f32 %v2139, %v2141
        %v2143 = vadd.f32 %v2139, %v2142
        %vm2144 = vweird.f32 %v1403
        %vm2145 = vweird.f32 %v2139
        %vm2146 = vmor %vm2144, %vm2145
        %v2147 = vsel %vm2146, %v2139, %v2143
        %v2148 = vand.u32 2147483647, %v1403
        %vm2149 = vcmp.eq.f32.partialorder %v2148, 8.507059e+37
        %v2150 = vand.u32 %v1403, 2147483648
        %v2151 = vor.u32 1.1754944e-38, %v2150
        %v2152 = vsel %vm2149, %v2151, %v2147
        %v2153 = vmul.f32 1.0, %v2152
        %v2154 = vrcp.pop %v1404
        %v2155 = vmul.f32 %v1404, %v2154
        %v2156 = vsub.f32 1.0, %v2155
        %v2157 = vmul.f32 %v2154, %v2156
        %v2158 = vadd.f32 %v2154, %v2157
        %vm2159 = vweird.f32 %v1404
        %vm2160 = vweird.f32 %v2154
        %vm2161 = vmor %vm2159, %vm2160
        %v2162 = vsel %vm2161, %v2154, %v2158
        %v2163 = vand.u32 2147483647, %v1404
        %vm2164 = vcmp.eq.f32.partialorder %v2163, 8.507059e+37
        %v2165 = vand.u32 %v1404, 2147483648
        %v2166 = vor.u32 1.1754944e-38, %v2165
        %v2167 = vsel %vm2164, %v2166, %v2162
        %v2168 = vmul.f32 1.0, %v2167
        %v2169 = vrcp.pop %v1405
        %v2170 = vmul.f32 %v1405, %v2169
        %v2171 = vsub.f32 1.0, %v2170
        %v2172 = vmul.f32 %v2169, %v2171
        %v2173 = vadd.f32 %v2169, %v2172
        %vm2174 = vweird.f32 %v1405
        %vm2175 = vweird.f32 %v2169
        %vm2176 = vmor %vm2174, %vm2175
        %v2177 = vsel %vm2176, %v2169, %v2173
        %v2178 = vand.u32 2147483647, %v1405
        %vm2179 = vcmp.eq.f32.partialorder %v2178, 8.507059e+37
        %v2180 = vand.u32 %v1405, 2147483648
        %v2181 = vor.u32 1.1754944e-38, %v2180
        %v2182 = vsel %vm2179, %v2181, %v2177
        %v2183 = vmul.f32 1.0, %v2182
        %v2184 = vrcp.pop %v1406
        %v2185 = vmul.f32 %v1406, %v2184
        %v2186 = vsub.f32 1.0, %v2185
        %v2187 = vmul.f32 %v2184, %v2186
        %v2188 = vadd.f32 %v2184, %v2187
        %vm2189 = vweird.f32 %v1406
        %vm2190 = vweird.f32 %v2184
        %vm2191 = vmor %vm2189, %vm2190
        %v2192 = vsel %vm2191, %v2184, %v2188
        %v2193 = vand.u32 2147483647, %v1406
        %vm2194 = vcmp.eq.f32.partialorder %v2193, 8.507059e+37
        %v2195 = vand.u32 %v1406, 2147483648
        %v2196 = vor.u32 1.1754944e-38, %v2195
        %v2197 = vsel %vm2194, %v2196, %v2192
        %v2198 = vmul.f32 1.0, %v2197
        %v2199 = vrcp.pop %v1407
        %v2200 = vmul.f32 %v1407, %v2199
        %v2201 = vsub.f32 1.0, %v2200
        %v2202 = vmul.f32 %v2199, %v2201
        %v2203 = vadd.f32 %v2199, %v2202
        %vm2204 = vweird.f32 %v1407
        %vm2205 = vweird.f32 %v2199
        %vm2206 = vmor %vm2204, %vm2205
        %v2207 = vsel %vm2206, %v2199, %v2203
        %v2208 = vand.u32 2147483647, %v1407
        %vm2209 = vcmp.eq.f32.partialorder %v2208, 8.507059e+37
        %v2210 = vand.u32 %v1407, 2147483648
        %v2211 = vor.u32 1.1754944e-38, %v2210
        %v2212 = vsel %vm2209, %v2211, %v2207
        %v2213 = vmul.f32 1.0, %v2212
        %v2214 = vrcp.pop %v1408
        %v2215 = vmul.f32 %v1408, %v2214
        %v2216 = vsub.f32 1.0, %v2215
        %v2217 = vmul.f32 %v2214, %v2216
        %v2218 = vadd.f32 %v2214, %v2217
        %vm2219 = vweird.f32 %v1408
        %vm2220 = vweird.f32 %v2214
        %vm2221 = vmor %vm2219, %vm2220
        %v2222 = vsel %vm2221, %v2214, %v2218
        %v2223 = vand.u32 2147483647, %v1408
        %vm2224 = vcmp.eq.f32.partialorder %v2223, 8.507059e+37
        %v2225 = vand.u32 %v1408, 2147483648
        %v2226 = vor.u32 1.1754944e-38, %v2225
        %v2227 = vsel %vm2224, %v2226, %v2222
        %v2228 = vmul.f32 1.0, %v2227
        %v2229 = vrcp.pop %v1409
        %v2230 = vmul.f32 %v1409, %v2229
        %v2231 = vsub.f32 1.0, %v2230
        %v2232 = vmul.f32 %v2229, %v2231
        %v2233 = vadd.f32 %v2229, %v2232
        %vm2234 = vweird.f32 %v1409
        %vm2235 = vweird.f32 %v2229
        %vm2236 = vmor %vm2234, %vm2235
        %v2237 = vsel %vm2236, %v2229, %v2233
        %v2238 = vand.u32 2147483647, %v1409
        %vm2239 = vcmp.eq.f32.partialorder %v2238, 8.507059e+37
        %v2240 = vand.u32 %v1409, 2147483648
        %v2241 = vor.u32 1.1754944e-38, %v2240
        %v2242 = vsel %vm2239, %v2241, %v2237
        %v2243 = vmul.f32 1.0, %v2242
        %v2244 = vrcp.pop %v1410
        %v2245 = vmul.f32 %v1410, %v2244
        %v2246 = vsub.f32 1.0, %v2245
        %v2247 = vmul.f32 %v2244, %v2246
        %v2248 = vadd.f32 %v2244, %v2247
        %vm2249 = vweird.f32 %v1410
        %vm2250 = vweird.f32 %v2244
        %vm2251 = vmor %vm2249, %vm2250
        %v2252 = vsel %vm2251, %v2244, %v2248
        %v2253 = vand.u32 2147483647, %v1410
        %vm2254 = vcmp.eq.f32.partialorder %v2253, 8.507059e+37
        %v2255 = vand.u32 %v1410, 2147483648
        %v2256 = vor.u32 1.1754944e-38, %v2255
        %v2257 = vsel %vm2254, %v2256, %v2252
        %v2258 = vmul.f32 1.0, %v2257
        %v2259 = vrcp.pop %v1411
        %v2260 = vmul.f32 %v1411, %v2259
        %v2261 = vsub.f32 1.0, %v2260
        %v2262 = vmul.f32 %v2259, %v2261
        %v2263 = vadd.f32 %v2259, %v2262
        %vm2264 = vweird.f32 %v1411
        %vm2265 = vweird.f32 %v2259
        %vm2266 = vmor %vm2264, %vm2265
        %v2267 = vsel %vm2266, %v2259, %v2263
        %v2268 = vand.u32 2147483647, %v1411
        %vm2269 = vcmp.eq.f32.partialorder %v2268, 8.507059e+37
        %v2270 = vand.u32 %v1411, 2147483648
        %v2271 = vor.u32 1.1754944e-38, %v2270
        %v2272 = vsel %vm2269, %v2271, %v2267
        %v2273 = vmul.f32 1.0, %v2272
        %v2274 = vrcp.pop %v1412
        %v2275 = vmul.f32 %v1412, %v2274
        %v2276 = vsub.f32 1.0, %v2275
        %v2277 = vmul.f32 %v2274, %v2276
        %v2278 = vadd.f32 %v2274, %v2277
        %vm2279 = vweird.f32 %v1412
        %vm2280 = vweird.f32 %v2274
        %vm2281 = vmor %vm2279, %vm2280
        %v2282 = vsel %vm2281, %v2274, %v2278
        %v2283 = vand.u32 2147483647, %v1412
        %vm2284 = vcmp.eq.f32.partialorder %v2283, 8.507059e+37
        %v2285 = vand.u32 %v1412, 2147483648
        %v2286 = vor.u32 1.1754944e-38, %v2285
        %v2287 = vsel %vm2284, %v2286, %v2282
        %v2288 = vmul.f32 1.0, %v2287
        %v2289 = vrcp.pop %v1413
        %v2290 = vmul.f32 %v1413, %v2289
        %v2291 = vsub.f32 1.0, %v2290
        %v2292 = vmul.f32 %v2289, %v2291
        %v2293 = vadd.f32 %v2289, %v2292
        %vm2294 = vweird.f32 %v1413
        %vm2295 = vweird.f32 %v2289
        %vm2296 = vmor %vm2294, %vm2295
        %v2297 = vsel %vm2296, %v2289, %v2293
        %v2298 = vand.u32 2147483647, %v1413
        %vm2299 = vcmp.eq.f32.partialorder %v2298, 8.507059e+37
        %v2300 = vand.u32 %v1413, 2147483648
        %v2301 = vor.u32 1.1754944e-38, %v2300
        %v2302 = vsel %vm2299, %v2301, %v2297
        %v2303 = vmul.f32 1.0, %v2302
        %v2304 = vrcp.pop %v1414
        %v2305 = vmul.f32 %v1414, %v2304
        %v2306 = vsub.f32 1.0, %v2305
        %v2307 = vmul.f32 %v2304, %v2306
        %v2308 = vadd.f32 %v2304, %v2307
        %vm2309 = vweird.f32 %v1414
        %vm2310 = vweird.f32 %v2304
        %vm2311 = vmor %vm2309, %vm2310
        %v2312 = vsel %vm2311, %v2304, %v2308
        %v2313 = vand.u32 2147483647, %v1414
        %vm2314 = vcmp.eq.f32.partialorder %v2313, 8.507059e+37
        %v2315 = vand.u32 %v1414, 2147483648
        %v2316 = vor.u32 1.1754944e-38, %v2315
        %v2317 = vsel %vm2314, %v2316, %v2312
        %v2318 = vmul.f32 1.0, %v2317
        %v2319 = vrcp.pop %v1415
        %v2320 = vmul.f32 %v1415, %v2319
        %v2321 = vsub.f32 1.0, %v2320
        %v2322 = vmul.f32 %v2319, %v2321
        %v2323 = vadd.f32 %v2319, %v2322
        %vm2324 = vweird.f32 %v1415
        %vm2325 = vweird.f32 %v2319
        %vm2326 = vmor %vm2324, %vm2325
        %v2327 = vsel %vm2326, %v2319, %v2323
        %v2328 = vand.u32 2147483647, %v1415
        %vm2329 = vcmp.eq.f32.partialorder %v2328, 8.507059e+37
        %v2330 = vand.u32 %v1415, 2147483648
        %v2331 = vor.u32 1.1754944e-38, %v2330
        %v2332 = vsel %vm2329, %v2331, %v2327
        %v2333 = vmul.f32 1.0, %v2332
        %v2334 = vrcp.pop %v1416
        %v2335 = vmul.f32 %v1416, %v2334
        %v2336 = vsub.f32 1.0, %v2335
        %v2337 = vmul.f32 %v2334, %v2336
        %v2338 = vadd.f32 %v2334, %v2337
        %vm2339 = vweird.f32 %v1416
        %vm2340 = vweird.f32 %v2334
        %vm2341 = vmor %vm2339, %vm2340
        %v2342 = vsel %vm2341, %v2334, %v2338
        %v2343 = vand.u32 2147483647, %v1416
        %vm2344 = vcmp.eq.f32.partialorder %v2343, 8.507059e+37
        %v2345 = vand.u32 %v1416, 2147483648
        %v2346 = vor.u32 1.1754944e-38, %v2345
        %v2347 = vsel %vm2344, %v2346, %v2342
        %v2348 = vmul.f32 1.0, %v2347
        %v2349 = vrcp.pop %v1417
        %v2350 = vmul.f32 %v1417, %v2349
        %v2351 = vsub.f32 1.0, %v2350
        %v2352 = vmul.f32 %v2349, %v2351
        %v2353 = vadd.f32 %v2349, %v2352
        %vm2354 = vweird.f32 %v1417
        %vm2355 = vweird.f32 %v2349
        %vm2356 = vmor %vm2354, %vm2355
        %v2357 = vsel %vm2356, %v2349, %v2353
        %v2358 = vand.u32 2147483647, %v1417
        %vm2359 = vcmp.eq.f32.partialorder %v2358, 8.507059e+37
        %v2360 = vand.u32 %v1417, 2147483648
        %v2361 = vor.u32 1.1754944e-38, %v2360
        %v2362 = vsel %vm2359, %v2361, %v2357
        %v2363 = vmul.f32 1.0, %v2362
        %v2364 = vrcp.pop %v1418
        %v2365 = vmul.f32 %v1418, %v2364
        %v2366 = vsub.f32 1.0, %v2365
        %v2367 = vmul.f32 %v2364, %v2366
        %v2368 = vadd.f32 %v2364, %v2367
        %vm2369 = vweird.f32 %v1418
        %vm2370 = vweird.f32 %v2364
        %vm2371 = vmor %vm2369, %vm2370
        %v2372 = vsel %vm2371, %v2364, %v2368
        %v2373 = vand.u32 2147483647, %v1418
        %vm2374 = vcmp.eq.f32.partialorder %v2373, 8.507059e+37
        %v2375 = vand.u32 %v1418, 2147483648
        %v2376 = vor.u32 1.1754944e-38, %v2375
        %v2377 = vsel %vm2374, %v2376, %v2372
        %v2378 = vmul.f32 1.0, %v2377
        %2379 = vst.msk [vmem:[%s249] sm:$0xff] %vm963, %v1433
        %2380 = vst.msk [vmem:[%s249 + $0x8] sm:$0xff] %vm963, %v1448
        %2381 = vst.msk [vmem:[%s249 + $0x10] sm:$0xff] %vm963, %v1463
        %2382 = vst.msk [vmem:[%s249 + $0x18] sm:$0xff] %vm963, %v1478
        %2383 = vst.msk [vmem:[%s249 + $0x20] sm:$0xff] %vm963, %v1493
        %2384 = vst.msk [vmem:[%s249 + $0x28] sm:$0xff] %vm963, %v1508
        %2385 = vst.msk [vmem:[%s249 + $0x30] sm:$0xff] %vm963, %v1523
        %2386 = vst.msk [vmem:[%s249 + $0x38] sm:$0xff] %vm963, %v1538
        %2387 = vst.msk [vmem:[%s249 + $0x40] sm:$0xff] %vm963, %v1553
        %2388 = vst.msk [vmem:[%s249 + $0x48] sm:$0xff] %vm963, %v1568
        %2389 = vst.msk [vmem:[%s249 + $0x50] sm:$0xff] %vm963, %v1583
        %2390 = vst.msk [vmem:[%s249 + $0x58] sm:$0xff] %vm963, %v1598
        %2391 = vst.msk [vmem:[%s249 + $0x60] sm:$0xff] %vm963, %v1613
        %2392 = vst.msk [vmem:[%s249 + $0x68] sm:$0xff] %vm963, %v1628
        %2393 = vst.msk [vmem:[%s249 + $0x70] sm:$0xff] %vm963, %v1643
        %2394 = vst.msk [vmem:[%s249 + $0x78] sm:$0xff] %vm963, %v1658
        %2395 = vst.msk [vmem:[%s249 + $0x80] sm:$0xff] %vm963, %v1673
        %2396 = vst.msk [vmem:[%s249 + $0x88] sm:$0xff] %vm963, %v1688
        %2397 = vst.msk [vmem:[%s249 + $0x90] sm:$0xff] %vm963, %v1703
        %2398 = vst.msk [vmem:[%s249 + $0x98] sm:$0xff] %vm963, %v1718
        %2399 = vst.msk [vmem:[%s249 + $0xa0] sm:$0xff] %vm963, %v1733
        %2400 = vst.msk [vmem:[%s249 + $0xa8] sm:$0xff] %vm963, %v1748
        %2401 = vst.msk [vmem:[%s249 + $0xb0] sm:$0xff] %vm963, %v1763
        %2402 = vst.msk [vmem:[%s249 + $0xb8] sm:$0xff] %vm963, %v1778
        %2403 = vst.msk [vmem:[%s249 + $0xc0] sm:$0xff] %vm963, %v1793
        %2404 = vst.msk [vmem:[%s249 + $0xc8] sm:$0xff] %vm963, %v1808
        %2405 = vst.msk [vmem:[%s249 + $0xd0] sm:$0xff] %vm963, %v1823
        %2406 = vst.msk [vmem:[%s249 + $0xd8] sm:$0xff] %vm963, %v1838
        %2407 = vst.msk [vmem:[%s249 + $0xe0] sm:$0xff] %vm963, %v1853
        %2408 = vst.msk [vmem:[%s249 + $0xe8] sm:$0xff] %vm963, %v1868
        %2409 = vst.msk [vmem:[%s249 + $0xf0] sm:$0xff] %vm963, %v1883
        %2410 = vst.msk [vmem:[%s249 + $0xf8] sm:$0xff] %vm963, %v1898
        %2411 = vst.msk [vmem:[%s249 + $0x100] sm:$0xff] %vm963, %v1913
        %2412 = vst.msk [vmem:[%s249 + $0x108] sm:$0xff] %vm963, %v1928
        %2413 = vst.msk [vmem:[%s249 + $0x110] sm:$0xff] %vm963, %v1943
        %2414 = vst.msk [vmem:[%s249 + $0x118] sm:$0xff] %vm963, %v1958
        %2415 = vst.msk [vmem:[%s249 + $0x120] sm:$0xff] %vm963, %v1973
        %2416 = vst.msk [vmem:[%s249 + $0x128] sm:$0xff] %vm963, %v1988
        %2417 = vst.msk [vmem:[%s249 + $0x130] sm:$0xff] %vm963, %v2003
        %2418 = vst.msk [vmem:[%s249 + $0x138] sm:$0xff] %vm963, %v2018
        %2419 = vst.msk [vmem:[%s249 + $0x140] sm:$0xff] %vm963, %v2033
        %2420 = vst.msk [vmem:[%s249 + $0x148] sm:$0xff] %vm963, %v2048
        %2421 = vst.msk [vmem:[%s249 + $0x150] sm:$0xff] %vm963, %v2063
        %2422 = vst.msk [vmem:[%s249 + $0x158] sm:$0xff] %vm963, %v2078
        %2423 = vst.msk [vmem:[%s249 + $0x160] sm:$0xff] %vm963, %v2093
        %2424 = vst.msk [vmem:[%s249 + $0x168] sm:$0xff] %vm963, %v2108
        %2425 = vst.msk [vmem:[%s249 + $0x170] sm:$0xff] %vm963, %v2123
        %2426 = vst.msk [vmem:[%s249 + $0x178] sm:$0xff] %vm963, %v2138
        %2427 = vst.msk [vmem:[%s249 + $0x180] sm:$0xff] %vm963, %v2153
        %2428 = vst.msk [vmem:[%s249 + $0x188] sm:$0xff] %vm963, %v2168
        %2429 = vst.msk [vmem:[%s249 + $0x190] sm:$0xff] %vm963, %v2183
        %2430 = vst.msk [vmem:[%s249 + $0x198] sm:$0xff] %vm963, %v2198
        %2431 = vst.msk [vmem:[%s249 + $0x1a0] sm:$0xff] %vm963, %v2213
        %2432 = vst.msk [vmem:[%s249 + $0x1a8] sm:$0xff] %vm963, %v2228
        %2433 = vst.msk [vmem:[%s249 + $0x1b0] sm:$0xff] %vm963, %v2243
        %2434 = vst.msk [vmem:[%s249 + $0x1b8] sm:$0xff] %vm963, %v2258
        %2435 = vst.msk [vmem:[%s249 + $0x1c0] sm:$0xff] %vm963, %v2273
        %2436 = vst.msk [vmem:[%s249 + $0x1c8] sm:$0xff] %vm963, %v2288
        %2437 = vst.msk [vmem:[%s249 + $0x1d0] sm:$0xff] %vm963, %v2303
        %2438 = vst.msk [vmem:[%s249 + $0x1d8] sm:$0xff] %vm963, %v2318
        %2439 = vst.msk [vmem:[%s249 + $0x1e0] sm:$0xff] %vm963, %v2333
        %2440 = vst.msk [vmem:[%s249 + $0x1e8] sm:$0xff] %vm963, %v2348
        %2441 = vst.msk [vmem:[%s249 + $0x1f0] sm:$0xff] %vm963, %v2363
        %2442 = vst.msk [vmem:[%s249 + $0x1f8] sm:$0xff] %vm963, %v2378
      $region40: #{tpu_custom_call.1} parent=31 // pred_fallthru
        _
      %s2443 = smul.u32 64, %s19
      %p2444 = scmp.lt.s32.totalorder %s2443, 127
      %s2445 = scalar_select %p2444, %s2443, 127
      %p2446 = scmp.lt.s32.totalorder %s20, 0
      %s2447 = scalar_select %p2446, %s20, 0
      %s2448 = sadd.s32 %s2447, %s2445
      %s2449 = smul.addr %s2448, 8
      %s2450 = scalar_lea.vmem %s3, %s2449
      // Predicated region
      $region41: #{tpu_custom_call.1} parent=31 // pred_check
        %p2451 = pneg %p135
      $region42: #{tpu_custom_call.1} parent=31 // pred_check_branch
        %2453 = sbr.rel (%p2451) target = $region44
      $region43: #{tpu_custom_call.1} parent=31 // pred_region
        %s2454 = smul.u32 64, %s19
      $region44: #{tpu_custom_call.1} parent=31 // pred_fallthru
        _
    $region32: #{tpu_custom_call.1} parent=5 // pred_fallthru
      _
    %p2455 = scmp.le.s32.totalorder 2, %s9
    // Predicated region
    $region45: #{tpu_custom_call.1} parent=5 // pred_check
      %p2456 = pneg %p2455
    $region46: #{tpu_custom_call.1} parent=5 // pred_check_branch
      %2458 = sbr.rel (%p2456) target = $region48
    $region47: #{tpu_custom_call.1} parent=5 // pred_region
      %s2459 = ssub.s32 %s9, 2
      // Predicated region
      $region49: #{tpu_custom_call.1} parent=47 // pred_check
        %p2460 = pneg %p141
      $region50: #{tpu_custom_call.1} parent=47 // pred_check_branch
        %2462 = sbr.rel (%p2460) target = $region52
      $region51: #{tpu_custom_call.1} parent=47 // pred_region
        %s2463 = smul.u32 64, %s22
        %p2464 = scmp.lt.s32.totalorder %s2463, 127
        %s2465 = scalar_select %p2464, %s2463, 127
        %p2466 = scmp.lt.s32.totalorder %s23, 0
        %s2467 = scalar_select %p2466, %s23, 0
        %s2468 = sadd.s32 %s2467, %s2465
        %s2469 = smul.addr %s2468, 8
        %s2470 = scalar_lea.vmem %s3, %s2469
      $region52: #{tpu_custom_call.1} parent=47 // pred_fallthru
        _
    $region48: #{tpu_custom_call.1} parent=5 // pred_fallthru
      _
  $region6: #{tpu_custom_call.1} parent=0 // loop_footer
    %s13 = sadd.s32 1, %s9
  $region7: #{tpu_custom_call.1} parent=0 // loop_footer_branch
    %8 = sbr.rel target = $region3
  $region8: #{tpu_custom_call.1} parent=0 // loop_exit
    _

</llo_original>
